<compile_context>
chip_gen: v5e
topology: v5e:2x2
jax: 0.10.0
libtpu: 0.0.40
codegen_flags: <defaults>
</compile_context>

<pallas_src>
import functools

import jax
import jax.numpy as jnp
from jax.experimental import pallas as pl
from jax.experimental.pallas import tpu as pltpu


TM_MAX = 4096  # K<=144 bf16 * 4096 lanes * 3 buffers ~ 3.5 MiB: fits scoped VMEM
TN_MAX = 512   # head latent-tile width (lane-dense, multiple of 128)
VMEM_LIMIT = 32 * 1024 * 1024


def _choose_tm(M):
    """Pick the M tile: single full-dim block for small M, else a 128-multiple
    tile capped at TM_MAX that yields >= ~4 grid steps (v7x has 2 TCs)."""
    if M <= 1024:
        return M                               # full-dim block is always legal
    target = -(-M // 4)                        # aim for >= 4 grid steps
    target = ((target + 127) // 128) * 128     # keep lanes 128-aligned
    return int(min(TM_MAX, max(512, target)))


# ----------------------------------------------------------------------------
# Pallas kernels
# ----------------------------------------------------------------------------
def _conv_matmul_kernel(w_ref, b_ref, p_ref, o_ref, *, relu):
    # (Cout, K) @ (K, TM) on the MXU with f32 accumulation; bias + ReLU in f32
    # on the VPU; result stored as bf16 (halves writeback / next-layer reads).
    acc = jnp.dot(w_ref[...], p_ref[...], preferred_element_type=jnp.float32)
    acc = acc + b_ref[...]                       # (Cout, 1) broadcasts over M
    if relu:
        acc = jnp.maximum(acc, 0.0)
    o_ref[...] = acc.astype(o_ref.dtype)


def conv_matmul(wm, b, p, relu=True):
    """Lane-dense conv-as-matmul: out(Cout, M) = wm(Cout, K) @ p(K, M) + b."""
    Cout, K = wm.shape
    K2, M = p.shape
    assert K == K2
    tm = _choose_tm(M)
    steps = pl.cdiv(M, tm)

    if steps >= 3:
        # Patch blocks are shallow in sublanes (K <= 144) so their DMAs are
        # latency-bound; a third buffer hides issue latency at tiny VMEM cost.
        patch_spec = pl.BlockSpec((K, tm), lambda i: (0, i),
                                  pipeline_mode=pl.Buffered(3))
    else:
        patch_spec = pl.BlockSpec((K, tm), lambda i: (0, i))

    flops = 2 * M * K * Cout
    bytes_accessed = (p.size * p.dtype.itemsize
                      + wm.size * wm.dtype.itemsize
                      + M * Cout * 2)
    return pl.pallas_call(
        functools.partial(_conv_matmul_kernel, relu=relu),
        out_shape=jax.ShapeDtypeStruct((Cout, M), jnp.bfloat16),
        grid=(steps,),
        in_specs=[
            pl.BlockSpec((Cout, K), lambda i: (0, 0)),   # weights resident
            pl.BlockSpec((Cout, 1), lambda i: (0, 0)),   # bias resident
            patch_spec,                                  # patches tiled over M
        ],
        out_specs=pl.BlockSpec((Cout, tm), lambda i: (0, i)),
        compiler_params=pltpu.CompilerParams(
            dimension_semantics=("parallel",),
            vmem_limit_bytes=VMEM_LIMIT,
        ),
        cost_estimate=pl.CostEstimate(
            flops=flops, transcendentals=0, bytes_accessed=bytes_accessed),
    )(wm, b, p)


def _head_kernel(h_ref, wm_ref, wlv_ref, bm_ref, blv_ref, eps_ref,
                 mean_ref, lv_ref, z_ref):
    # Fused fc_mean + fc_log_var + reparameterization for one latent tile.
    # bf16 operands, f32 accumulation / bias / exp / sampling.
    h = h_ref[...]
    z_mean = jnp.dot(h, wm_ref[...], preferred_element_type=jnp.float32)
    z_mean = z_mean + bm_ref[...]
    z_lv = jnp.dot(h, wlv_ref[...], preferred_element_type=jnp.float32)
    z_lv = z_lv + blv_ref[...]
    mean_ref[...] = z_mean
    lv_ref[...] = z_lv
    z_ref[...] = z_mean + jnp.exp(0.5 * z_lv) * eps_ref[...]


def encoder_head(h_flat, wm, wlv, bm, blv, eps):
    B, latent = h_flat.shape
    tn = latent if latent <= TN_MAX else TN_MAX
    steps = pl.cdiv(latent, tn)
    out_sds = jax.ShapeDtypeStruct((B, latent), jnp.float32)
    out_spec = pl.BlockSpec((B, tn), lambda j: (0, j))
    return pl.pallas_call(
        _head_kernel,
        out_shape=(out_sds, out_sds, out_sds),
        grid=(steps,),
        in_specs=[
            pl.BlockSpec((B, latent), lambda j: (0, 0)),      # h resident (full K)
            pl.BlockSpec((latent, tn), lambda j: (0, j)),     # fc_mean weights
            pl.BlockSpec((latent, tn), lambda j: (0, j)),     # fc_log_var weights
            pl.BlockSpec((1, tn), lambda j: (0, j)),          # fc_mean bias
            pl.BlockSpec((1, tn), lambda j: (0, j)),          # fc_log_var bias
            pl.BlockSpec((B, tn), lambda j: (0, j)),          # epsilon
        ],
        out_specs=(out_spec, out_spec, out_spec),
        compiler_params=pltpu.CompilerParams(
            dimension_semantics=("parallel",),
            vmem_limit_bytes=VMEM_LIMIT,
        ),
        cost_estimate=pl.CostEstimate(
            flops=2 * B * latent * 2 * latent,
            transcendentals=B * latent,
            bytes_accessed=(h_flat.size * 2 + wm.size * 2 + wlv.size * 2
                            + eps.size * 4 + 3 * B * latent * 4)),
    )(h_flat, wm, wlv, bm, blv, eps)


# ----------------------------------------------------------------------------
# Conv3d layers via channel-first im2col + Pallas matmul (bf16 activations)
# ----------------------------------------------------------------------------
def conv3d_spatial_cf(x, wm, b, relu=True):
    """x: (Cin, B, T, H, W) bf16. Conv3d (1,3,3), stride (1,2,2), pad (0,1,1).
    wm: packed (Cout, 9*Cin) bf16, K order (kh, kw, Cin). -> (Cout, B, T, H/2, W/2)."""
    Cin, B, T, H, W = x.shape
    Cout = wm.shape[0]
    s = 2
    Ho, Wo = H // s, W // s
    xp = jnp.pad(x, ((0, 0), (0, 0), (0, 0), (1, 1), (1, 1)))
    patches = []
    for kh in range(3):
        for kw in range(3):
            patches.append(
                xp[:, :, :,
                   kh:kh + s * (Ho - 1) + 1:s,
                   kw:kw + s * (Wo - 1) + 1:s])
    p = jnp.stack(patches, axis=0)                       # (9, Cin, B, T, Ho, Wo)
    M = B * T * Ho * Wo
    p = p.reshape(9 * Cin, M)                            # bf16 already
    out = conv_matmul(wm, b, p, relu=relu)
    return out.reshape(Cout, B, T, Ho, Wo)


def conv3d_temporal_cf(x, wm, b, relu=True):
    """x: (Cin, B, T, H, W) bf16. Conv3d (3,1,1), stride (2,1,1), pad (1,0,0).
    wm: packed (Cout, 3*Cin) bf16, K order (kt, Cin). -> (Cout, B, T/2, H, W)."""
    Cin, B, T, H, W = x.shape
    Cout = wm.shape[0]
    s = 2
    To = T // s
    xp = jnp.pad(x, ((0, 0), (0, 0), (1, 1), (0, 0), (0, 0)))
    patches = [xp[:, :, kt:kt + s * (To - 1) + 1:s] for kt in range(3)]
    p = jnp.stack(patches, axis=0)                       # (3, Cin, B, To, H, W)
    M = B * To * H * W
    p = p.reshape(3 * Cin, M)
    out = conv_matmul(wm, b, p, relu=relu)
    return out.reshape(Cout, B, To, H, W)


# ----------------------------------------------------------------------------
# Parameters (deterministic, synthetic; PyTorch layouts) + one-time packing
# ----------------------------------------------------------------------------
def init_params(C, T, H, W, key):
    latent = 16 * (T // 8) * (H // 8) * (W // 8)
    specs = {
        # Conv3d weights: (Cout, Cin, kt, kh, kw)
        "conv1_w": (4, C, 1, 3, 3),    "conv1_b": (4,),
        "tconv1_w": (4, 4, 3, 1, 1),   "tconv1_b": (4,),
        "conv2_w": (8, 4, 1, 3, 3),    "conv2_b": (8,),
        "tconv2_w": (8, 8, 3, 1, 1),   "tconv2_b": (8,),
        "conv3_w": (16, 8, 1, 3, 3),   "conv3_b": (16,),
        "tconv3_w": (16, 16, 3, 1, 1), "tconv3_b": (16,),
        # Linear weights: PyTorch layout (out, in)
        "fc_mean_w": (latent, latent), "fc_mean_b": (latent,),
        "fc_lv_w": (latent, latent),   "fc_lv_b": (latent,),
    }
    params = {}
    keys = jax.random.split(key, len(specs))
    for k, (name, shape) in zip(keys, sorted(specs.items())):
        if name.endswith("_b"):
            params[name] = jnp.zeros(shape, jnp.float32)
        else:
            fan_in = 1
            for d in shape[1:]:
                fan_in *= d
            params[name] = (jax.random.normal(k, shape, jnp.float32)
                            / jnp.sqrt(jnp.float32(fan_in)))
    return params, latent


def pack_params(params):
    """One-time weight re-layout (hoisted out of the per-step forward)."""
    def pack_spatial_w(w):       # (Cout, Cin, 1, 3, 3) -> (Cout, 9*Cin), K=(kh,kw,Cin)
        Cout = w.shape[0]
        return (w[:, :, 0].transpose(0, 2, 3, 1)
                .reshape(Cout, -1).astype(jnp.bfloat16))

    def pack_temporal_w(w):      # (Cout, Cin, 3, 1, 1) -> (Cout, 3*Cin), K=(kt,Cin)
        Cout = w.shape[0]
        return (w[:, :, :, 0, 0].transpose(0, 2, 1)
                .reshape(Cout, -1).astype(jnp.bfloat16))

    def pack_b(b):
        return b.reshape(-1, 1).astype(jnp.float32)

    return {
        "c1_w": pack_spatial_w(params["conv1_w"]),   "c1_b": pack_b(params["conv1_b"]),
        "t1_w": pack_temporal_w(params["tconv1_w"]), "t1_b": pack_b(params["tconv1_b"]),
        "c2_w": pack_spatial_w(params["conv2_w"]),   "c2_b": pack_b(params["conv2_b"]),
        "t2_w": pack_temporal_w(params["tconv2_w"]), "t2_b": pack_b(params["tconv2_b"]),
        "c3_w": pack_spatial_w(params["conv3_w"]),   "c3_b": pack_b(params["conv3_b"]),
        "t3_w": pack_temporal_w(params["tconv3_w"]), "t3_b": pack_b(params["tconv3_b"]),
        # Linear (out, in) -> (in, out) bf16; biases as (1, latent) f32.
        "fc_mean_w": params["fc_mean_w"].T.astype(jnp.bfloat16),
        "fc_lv_w": params["fc_lv_w"].T.astype(jnp.bfloat16),
        "fc_mean_b": params["fc_mean_b"].reshape(1, -1).astype(jnp.float32),
        "fc_lv_b": params["fc_lv_b"].reshape(1, -1).astype(jnp.float32),
    }


# ----------------------------------------------------------------------------
# Encoder forward (matches PyTorch Encoder.forward)
# ----------------------------------------------------------------------------
def encoder_forward(x, packed, eps, T, H, W):
    B = x.shape[0]
    # One-time relayout NCTHW -> channel-first (C, B, T, H, W) + bf16 cast; all
    # subsequent layers stay channel-first bf16 (no per-layer transposes).
    h = jnp.transpose(x.astype(jnp.bfloat16), (1, 0, 2, 3, 4))
    h = conv3d_spatial_cf(h, packed["c1_w"], packed["c1_b"])
    h = conv3d_temporal_cf(h, packed["t1_w"], packed["t1_b"])
    h = conv3d_spatial_cf(h, packed["c2_w"], packed["c2_b"])
    h = conv3d_temporal_cf(h, packed["t2_w"], packed["t2_b"])
    h = conv3d_spatial_cf(h, packed["c3_w"], packed["c3_b"])
    h = conv3d_temporal_cf(h, packed["t3_w"], packed["t3_b"])
    # Flatten exactly like nn.Flatten on NCTHW (channel-major per batch).
    latent = 16 * (T // 8) * (H // 8) * (W // 8)
    h_flat = jnp.transpose(h, (1, 0, 2, 3, 4)).reshape(B, latent)   # bf16
    z_mean, z_log_var, z = encoder_head(
        h_flat, packed["fc_mean_w"], packed["fc_lv_w"],
        packed["fc_mean_b"], packed["fc_lv_b"], eps)
    z = z.reshape(B, 16, T // 8, H // 8, W // 8)
    return z_mean, z_log_var, z


# ----------------------------------------------------------------------------
# Pure-JAX f32 reference (for tolerance-asserting the bf16 kernel path)
# ----------------------------------------------------------------------------
def encoder_reference(x, params, eps, T, H, W):
    def conv3d(h, w, b, stride, pad):
        y = jax.lax.conv_general_dilated(
            h, w, window_strides=stride, padding=pad,
            dimension_numbers=("NCDHW", "OIDHW", "NCDHW"))
        return jax.nn.relu(y + b.reshape(1, -1, 1, 1, 1))

    sp_pad = ((0, 0), (1, 1), (1, 1))
    tp_pad = ((1, 1), (0, 0), (0, 0))
    h = conv3d(x, params["conv1_w"], params["conv1_b"], (1, 2, 2), sp_pad)
    h = conv3d(h, params["tconv1_w"], params["tconv1_b"], (2, 1, 1), tp_pad)
    h = conv3d(h, params["conv2_w"], params["conv2_b"], (1, 2, 2), sp_pad)
    h = conv3d(h, params["tconv2_w"], params["tconv2_b"], (2, 1, 1), tp_pad)
    h = conv3d(h, params["conv3_w"], params["conv3_b"], (1, 2, 2), sp_pad)
    h = conv3d(h, params["tconv3_w"], params["tconv3_b"], (2, 1, 1), tp_pad)
    B = x.shape[0]
    hf = h.reshape(B, -1)
    zm = hf @ params["fc_mean_w"].T + params["fc_mean_b"]
    zl = hf @ params["fc_lv_w"].T + params["fc_lv_b"]
    z = zm + jnp.exp(0.5 * zl) * eps
    return zm, zl, z.reshape(B, 16, T // 8, H // 8, W // 8)


if __name__ == "__main__":
    # Small shapes consistent with the module: T, H, W divisible by 8.
    B, C, T, H, W = 2, 3, 8, 16, 16

    root = jax.random.PRNGKey(0)
    k_params, k_x, k_eps = jax.random.split(root, 3)
    params, latent = init_params(C, T, H, W, k_params)
    packed = pack_params(params)   # one-time weight packing (hoisted)

    x = jax.random.normal(k_x, (B, C, T, H, W), jnp.float32)
    # TODO(synk): PyTorch's Sampling draws epsilon from torch Normal(0,1) at
    # runtime; here the reparameterization noise is a deterministic jax.random
    # draw with the same distribution, passed in as an input.
    eps = jax.random.normal(k_eps, (B, latent), jnp.float32)

    fwd = jax.jit(functools.partial(encoder_forward, T=T, H=H, W=W))
    z_mean, z_log_var, z = fwd(x, packed, eps)
    jax.block_until_ready((z_mean, z_log_var, z))

    assert z_mean.shape == (B, latent), z_mean.shape
    assert z_log_var.shape == (B, latent), z_log_var.shape
    assert z.shape == (B, 16, T // 8, H // 8, W // 8), z.shape
    assert all(a.dtype == jnp.float32 for a in (z_mean, z_log_var, z))
    assert all(bool(jnp.all(jnp.isfinite(a))) for a in (z_mean, z_log_var, z))

    # Tolerance check of the bf16 Pallas path against the pure-JAX f32 reference.
    rm, rl, rz = encoder_reference(x, params, eps, T, H, W)
    for got, ref in ((z_mean, rm), (z_log_var, rl), (z, rz)):
        max_diff = float(jnp.max(jnp.abs(got - ref)))
        assert max_diff < 0.1, f"kernel/reference mismatch: max|diff|={max_diff}"

    print("KERNEL_OK")
</pallas_src>

<mosaic_0001>
module attributes {stable_mosaic.version = 11 : i64} {
  func.func @_conv_matmul_kernel(%arg0: i32, %arg1: memref<4x27xbf16, #tpu.memory_space<vmem>>, %arg2: memref<4x1xf32, #tpu.memory_space<vmem>>, %arg3: memref<27x1024xbf16, #tpu.memory_space<vmem>>, %arg4: memref<4x1024xbf16, #tpu.memory_space<vmem>>) attributes {dimension_semantics = [#tpu.dimension_semantics<parallel>], iteration_bounds = array<i64: 1>, scalar_prefetch = 0 : i64, scratch_operands = 0 : i64, tpu.core_type = #tpu.core_type<tc>, window_params = [{pipeline_mode = #tpu.pipeline_mode<synchronous>, transform_indices = @transform_0, window_bounds = array<i64: 4, 27>}, {pipeline_mode = #tpu.pipeline_mode<synchronous>, transform_indices = @transform_1, window_bounds = array<i64: 4, 1>}, {transform_indices = @transform_2, window_bounds = array<i64: 27, 1024>}, {transform_indices = @transform_3, window_bounds = array<i64: 4, 1024>}]} {
    %c0 = arith.constant 0 : index
    %c0_0 = arith.constant 0 : index
    %0 = vector.load %arg1[%c0, %c0_0] : memref<4x27xbf16, #tpu.memory_space<vmem>>, vector<4x27xbf16>
    %c0_1 = arith.constant 0 : index
    %c0_2 = arith.constant 0 : index
    %1 = vector.load %arg3[%c0_1, %c0_2] : memref<27x1024xbf16, #tpu.memory_space<vmem>>, vector<27x1024xbf16>
    %cst = arith.constant dense<0.000000e+00> : vector<4x1024xf32>
    %2 = tpu.matmul %0, %1, %cst {dimension_numbers = #tpu.dot_dimension_numbers<[1], [0], [0], [1], [0, 0, 1, 1], [], []>} : vector<4x27xbf16>, vector<27x1024xbf16>, vector<4x1024xf32> -> vector<4x1024xf32>
    %c0_3 = arith.constant 0 : index
    %c0_4 = arith.constant 0 : index
    %3 = vector.load %arg2[%c0_3, %c0_4] : memref<4x1xf32, #tpu.memory_space<vmem>>, vector<4x1xf32>
    %4 = vector.broadcast %3 : vector<4x1xf32> to vector<4x1024xf32>
    %5 = arith.addf %2, %4 : vector<4x1024xf32>
    %cst_5 = arith.constant 0.000000e+00 : f32
    %6 = vector.broadcast %cst_5 : f32 to vector<4x1024xf32>
    %7 = arith.maximumf %5, %6 : vector<4x1024xf32>
    %8 = arith.truncf %7 : vector<4x1024xf32> to vector<4x1024xbf16>
    %c0_6 = arith.constant 0 : index
    %c0_7 = arith.constant 0 : index
    %9 = vector.load %arg4[%c0_6, %c0_7] : memref<4x1024xbf16, #tpu.memory_space<vmem>>, vector<4x1024xbf16>
    tpu.vector_store %arg4[%c0_6, %c0_7], %8 {strides = array<i32>} : memref<4x1024xbf16, #tpu.memory_space<vmem>>, vector<4x1024xbf16>,
    return
  }
  func.func @transform_0(%arg0: i32) -> (i32, i32) {
    %c0_i32 = arith.constant 0 : i32
    %c0_i32_0 = arith.constant 0 : i32
    %c0_i32_1 = arith.constant 0 : i32
    return %c0_i32, %c0_i32_0 : i32, i32
  }
  func.func @transform_1(%arg0: i32) -> (i32, i32) {
    %c0_i32 = arith.constant 0 : i32
    %c0_i32_0 = arith.constant 0 : i32
    %c0_i32_1 = arith.constant 0 : i32
    return %c0_i32, %c0_i32_0 : i32, i32
  }
  func.func @transform_2(%arg0: i32) -> (i32, i32) {
    %c0_i32 = arith.constant 0 : i32
    %c0_i32_0 = arith.constant 0 : i32
    return %c0_i32, %arg0 : i32, i32
  }
  func.func @transform_3(%arg0: i32) -> (i32, i32) {
    %c0_i32 = arith.constant 0 : i32
    %c0_i32_0 = arith.constant 0 : i32
    return %c0_i32, %arg0 : i32, i32
  }
}

module attributes {stable_mosaic.version = 11 : i64} {
  func.func @_conv_matmul_kernel(%arg0: i32, %arg1: memref<4x12xbf16, #tpu.memory_space<vmem>>, %arg2: memref<4x1xf32, #tpu.memory_space<vmem>>, %arg3: memref<12x512xbf16, #tpu.memory_space<vmem>>, %arg4: memref<4x512xbf16, #tpu.memory_space<vmem>>) attributes {dimension_semantics = [#tpu.dimension_semantics<parallel>], iteration_bounds = array<i64: 1>, scalar_prefetch = 0 : i64, scratch_operands = 0 : i64, tpu.core_type = #tpu.core_type<tc>, window_params = [{pipeline_mode = #tpu.pipeline_mode<synchronous>, transform_indices = @transform_0, window_bounds = array<i64: 4, 12>}, {pipeline_mode = #tpu.pipeline_mode<synchronous>, transform_indices = @transform_1, window_bounds = array<i64: 4, 1>}, {transform_indices = @transform_2, window_bounds = array<i64: 12, 512>}, {transform_indices = @transform_3, window_bounds = array<i64: 4, 512>}]} {
    %c0 = arith.constant 0 : index
    %c0_0 = arith.constant 0 : index
    %0 = vector.load %arg1[%c0, %c0_0] : memref<4x12xbf16, #tpu.memory_space<vmem>>, vector<4x12xbf16>
    %c0_1 = arith.constant 0 : index
    %c0_2 = arith.constant 0 : index
    %1 = vector.load %arg3[%c0_1, %c0_2] : memref<12x512xbf16, #tpu.memory_space<vmem>>, vector<12x512xbf16>
    %cst = arith.constant dense<0.000000e+00> : vector<4x512xf32>
    %2 = tpu.matmul %0, %1, %cst {dimension_numbers = #tpu.dot_dimension_numbers<[1], [0], [0], [1], [0, 0, 1, 1], [], []>} : vector<4x12xbf16>, vector<12x512xbf16>, vector<4x512xf32> -> vector<4x512xf32>
    %c0_3 = arith.constant 0 : index
    %c0_4 = arith.constant 0 : index
    %3 = vector.load %arg2[%c0_3, %c0_4] : memref<4x1xf32, #tpu.memory_space<vmem>>, vector<4x1xf32>
    %4 = vector.broadcast %3 : vector<4x1xf32> to vector<4x512xf32>
    %5 = arith.addf %2, %4 : vector<4x512xf32>
    %cst_5 = arith.constant 0.000000e+00 : f32
    %6 = vector.broadcast %cst_5 : f32 to vector<4x512xf32>
    %7 = arith.maximumf %5, %6 : vector<4x512xf32>
    %8 = arith.truncf %7 : vector<4x512xf32> to vector<4x512xbf16>
    %c0_6 = arith.constant 0 : index
    %c0_7 = arith.constant 0 : index
    %9 = vector.load %arg4[%c0_6, %c0_7] : memref<4x512xbf16, #tpu.memory_space<vmem>>, vector<4x512xbf16>
    tpu.vector_store %arg4[%c0_6, %c0_7], %8 {strides = array<i32>} : memref<4x512xbf16, #tpu.memory_space<vmem>>, vector<4x512xbf16>,
    return
  }
  func.func @transform_0(%arg0: i32) -> (i32, i32) {
    %c0_i32 = arith.constant 0 : i32
    %c0_i32_0 = arith.constant 0 : i32
    %c0_i32_1 = arith.constant 0 : i32
    return %c0_i32, %c0_i32_0 : i32, i32
  }
  func.func @transform_1(%arg0: i32) -> (i32, i32) {
    %c0_i32 = arith.constant 0 : i32
    %c0_i32_0 = arith.constant 0 : i32
    %c0_i32_1 = arith.constant 0 : i32
    return %c0_i32, %c0_i32_0 : i32, i32
  }
  func.func @transform_2(%arg0: i32) -> (i32, i32) {
    %c0_i32 = arith.constant 0 : i32
    %c0_i32_0 = arith.constant 0 : i32
    return %c0_i32, %arg0 : i32, i32
  }
  func.func @transform_3(%arg0: i32) -> (i32, i32) {
    %c0_i32 = arith.constant 0 : i32
    %c0_i32_0 = arith.constant 0 : i32
    return %c0_i32, %arg0 : i32, i32
  }
}

module attributes {stable_mosaic.version = 11 : i64} {
  func.func @_conv_matmul_kernel(%arg0: i32, %arg1: memref<8x36xbf16, #tpu.memory_space<vmem>>, %arg2: memref<8x1xf32, #tpu.memory_space<vmem>>, %arg3: memref<36x128xbf16, #tpu.memory_space<vmem>>, %arg4: memref<8x128xbf16, #tpu.memory_space<vmem>>) attributes {dimension_semantics = [#tpu.dimension_semantics<parallel>], iteration_bounds = array<i64: 1>, scalar_prefetch = 0 : i64, scratch_operands = 0 : i64, tpu.core_type = #tpu.core_type<tc>, window_params = [{pipeline_mode = #tpu.pipeline_mode<synchronous>, transform_indices = @transform_0, window_bounds = array<i64: 8, 36>}, {pipeline_mode = #tpu.pipeline_mode<synchronous>, transform_indices = @transform_1, window_bounds = array<i64: 8, 1>}, {transform_indices = @transform_2, window_bounds = array<i64: 36, 128>}, {transform_indices = @transform_3, window_bounds = array<i64: 8, 128>}]} {
    %c0 = arith.constant 0 : index
    %c0_0 = arith.constant 0 : index
    %0 = vector.load %arg1[%c0, %c0_0] : memref<8x36xbf16, #tpu.memory_space<vmem>>, vector<8x36xbf16>
    %c0_1 = arith.constant 0 : index
    %c0_2 = arith.constant 0 : index
    %1 = vector.load %arg3[%c0_1, %c0_2] : memref<36x128xbf16, #tpu.memory_space<vmem>>, vector<36x128xbf16>
    %cst = arith.constant dense<0.000000e+00> : vector<8x128xf32>
    %2 = tpu.matmul %0, %1, %cst {dimension_numbers = #tpu.dot_dimension_numbers<[1], [0], [0], [1], [0, 0, 1, 1], [], []>} : vector<8x36xbf16>, vector<36x128xbf16>, vector<8x128xf32> -> vector<8x128xf32>
    %c0_3 = arith.constant 0 : index
    %c0_4 = arith.constant 0 : index
    %3 = vector.load %arg2[%c0_3, %c0_4] : memref<8x1xf32, #tpu.memory_space<vmem>>, vector<8x1xf32>
    %4 = vector.broadcast %3 : vector<8x1xf32> to vector<8x128xf32>
    %5 = arith.addf %2, %4 : vector<8x128xf32>
    %cst_5 = arith.constant 0.000000e+00 : f32
    %6 = vector.broadcast %cst_5 : f32 to vector<8x128xf32>
    %7 = arith.maximumf %5, %6 : vector<8x128xf32>
    %8 = arith.truncf %7 : vector<8x128xf32> to vector<8x128xbf16>
    %c0_6 = arith.constant 0 : index
    %c0_7 = arith.constant 0 : index
    %9 = vector.load %arg4[%c0_6, %c0_7] : memref<8x128xbf16, #tpu.memory_space<vmem>>, vector<8x128xbf16>
    tpu.vector_store %arg4[%c0_6, %c0_7], %8 {strides = array<i32>} : memref<8x128xbf16, #tpu.memory_space<vmem>>, vector<8x128xbf16>,
    return
  }
  func.func @transform_0(%arg0: i32) -> (i32, i32) {
    %c0_i32 = arith.constant 0 : i32
    %c0_i32_0 = arith.constant 0 : i32
    %c0_i32_1 = arith.constant 0 : i32
    return %c0_i32, %c0_i32_0 : i32, i32
  }
  func.func @transform_1(%arg0: i32) -> (i32, i32) {
    %c0_i32 = arith.constant 0 : i32
    %c0_i32_0 = arith.constant 0 : i32
    %c0_i32_1 = arith.constant 0 : i32
    return %c0_i32, %c0_i32_0 : i32, i32
  }
  func.func @transform_2(%arg0: i32) -> (i32, i32) {
    %c0_i32 = arith.constant 0 : i32
    %c0_i32_0 = arith.constant 0 : i32
    return %c0_i32, %arg0 : i32, i32
  }
  func.func @transform_3(%arg0: i32) -> (i32, i32) {
    %c0_i32 = arith.constant 0 : i32
    %c0_i32_0 = arith.constant 0 : i32
    return %c0_i32, %arg0 : i32, i32
  }
}

module attributes {stable_mosaic.version = 11 : i64} {
  func.func @_conv_matmul_kernel(%arg0: i32, %arg1: memref<8x24xbf16, #tpu.memory_space<vmem>>, %arg2: memref<8x1xf32, #tpu.memory_space<vmem>>, %arg3: memref<24x64xbf16, #tpu.memory_space<vmem>>, %arg4: memref<8x64xbf16, #tpu.memory_space<vmem>>) attributes {dimension_semantics = [#tpu.dimension_semantics<parallel>], iteration_bounds = array<i64: 1>, scalar_prefetch = 0 : i64, scratch_operands = 0 : i64, tpu.core_type = #tpu.core_type<tc>, window_params = [{pipeline_mode = #tpu.pipeline_mode<synchronous>, transform_indices = @transform_0, window_bounds = array<i64: 8, 24>}, {pipeline_mode = #tpu.pipeline_mode<synchronous>, transform_indices = @transform_1, window_bounds = array<i64: 8, 1>}, {transform_indices = @transform_2, window_bounds = array<i64: 24, 64>}, {transform_indices = @transform_3, window_bounds = array<i64: 8, 64>}]} {
    %c0 = arith.constant 0 : index
    %c0_0 = arith.constant 0 : index
    %0 = vector.load %arg1[%c0, %c0_0] : memref<8x24xbf16, #tpu.memory_space<vmem>>, vector<8x24xbf16>
    %c0_1 = arith.constant 0 : index
    %c0_2 = arith.constant 0 : index
    %1 = vector.load %arg3[%c0_1, %c0_2] : memref<24x64xbf16, #tpu.memory_space<vmem>>, vector<24x64xbf16>
    %cst = arith.constant dense<0.000000e+00> : vector<8x64xf32>
    %2 = tpu.matmul %0, %1, %cst {dimension_numbers = #tpu.dot_dimension_numbers<[1], [0], [0], [1], [0, 0, 1, 1], [], []>} : vector<8x24xbf16>, vector<24x64xbf16>, vector<8x64xf32> -> vector<8x64xf32>
    %c0_3 = arith.constant 0 : index
    %c0_4 = arith.constant 0 : index
    %3 = vector.load %arg2[%c0_3, %c0_4] : memref<8x1xf32, #tpu.memory_space<vmem>>, vector<8x1xf32>
    %4 = vector.broadcast %3 : vector<8x1xf32> to vector<8x64xf32>
    %5 = arith.addf %2, %4 : vector<8x64xf32>
    %cst_5 = arith.constant 0.000000e+00 : f32
    %6 = vector.broadcast %cst_5 : f32 to vector<8x64xf32>
    %7 = arith.maximumf %5, %6 : vector<8x64xf32>
    %8 = arith.truncf %7 : vector<8x64xf32> to vector<8x64xbf16>
    %c0_6 = arith.constant 0 : index
    %c0_7 = arith.constant 0 : index
    %9 = vector.load %arg4[%c0_6, %c0_7] : memref<8x64xbf16, #tpu.memory_space<vmem>>, vector<8x64xbf16>
    tpu.vector_store %arg4[%c0_6, %c0_7], %8 {strides = array<i32>} : memref<8x64xbf16, #tpu.memory_space<vmem>>, vector<8x64xbf16>,
    return
  }
  func.func @transform_0(%arg0: i32) -> (i32, i32) {
    %c0_i32 = arith.constant 0 : i32
    %c0_i32_0 = arith.constant 0 : i32
    %c0_i32_1 = arith.constant 0 : i32
    return %c0_i32, %c0_i32_0 : i32, i32
  }
  func.func @transform_1(%arg0: i32) -> (i32, i32) {
    %c0_i32 = arith.constant 0 : i32
    %c0_i32_0 = arith.constant 0 : i32
    %c0_i32_1 = arith.constant 0 : i32
    return %c0_i32, %c0_i32_0 : i32, i32
  }
  func.func @transform_2(%arg0: i32) -> (i32, i32) {
    %c0_i32 = arith.constant 0 : i32
    %c0_i32_0 = arith.constant 0 : i32
    return %c0_i32, %arg0 : i32, i32
  }
  func.func @transform_3(%arg0: i32) -> (i32, i32) {
    %c0_i32 = arith.constant 0 : i32
    %c0_i32_0 = arith.constant 0 : i32
    return %c0_i32, %arg0 : i32, i32
  }
}

module attributes {stable_mosaic.version = 11 : i64} {
  func.func @_conv_matmul_kernel(%arg0: i32, %arg1: memref<16x72xbf16, #tpu.memory_space<vmem>>, %arg2: memref<16x1xf32, #tpu.memory_space<vmem>>, %arg3: memref<72x16xbf16, #tpu.memory_space<vmem>>, %arg4: memref<16x16xbf16, #tpu.memory_space<vmem>>) attributes {dimension_semantics = [#tpu.dimension_semantics<parallel>], iteration_bounds = array<i64: 1>, scalar_prefetch = 0 : i64, scratch_operands = 0 : i64, tpu.core_type = #tpu.core_type<tc>, window_params = [{pipeline_mode = #tpu.pipeline_mode<synchronous>, transform_indices = @transform_0, window_bounds = array<i64: 16, 72>}, {pipeline_mode = #tpu.pipeline_mode<synchronous>, transform_indices = @transform_1, window_bounds = array<i64: 16, 1>}, {transform_indices = @transform_2, window_bounds = array<i64: 72, 16>}, {transform_indices = @transform_3, window_bounds = array<i64: 16, 16>}]} {
    %c0 = arith.constant 0 : index
    %c0_0 = arith.constant 0 : index
    %0 = vector.load %arg1[%c0, %c0_0] : memref<16x72xbf16, #tpu.memory_space<vmem>>, vector<16x72xbf16>
    %c0_1 = arith.constant 0 : index
    %c0_2 = arith.constant 0 : index
    %1 = vector.load %arg3[%c0_1, %c0_2] : memref<72x16xbf16, #tpu.memory_space<vmem>>, vector<72x16xbf16>
    %cst = arith.constant dense<0.000000e+00> : vector<16x16xf32>
    %2 = tpu.matmul %0, %1, %cst {dimension_numbers = #tpu.dot_dimension_numbers<[1], [0], [0], [1], [0, 0, 1, 1], [], []>} : vector<16x72xbf16>, vector<72x16xbf16>, vector<16x16xf32> -> vector<16x16xf32>
    %c0_3 = arith.constant 0 : index
    %c0_4 = arith.constant 0 : index
    %3 = vector.load %arg2[%c0_3, %c0_4] : memref<16x1xf32, #tpu.memory_space<vmem>>, vector<16x1xf32>
    %4 = vector.broadcast %3 : vector<16x1xf32> to vector<16x16xf32>
    %5 = arith.addf %2, %4 : vector<16x16xf32>
    %cst_5 = arith.constant 0.000000e+00 : f32
    %6 = vector.broadcast %cst_5 : f32 to vector<16x16xf32>
    %7 = arith.maximumf %5, %6 : vector<16x16xf32>
    %8 = arith.truncf %7 : vector<16x16xf32> to vector<16x16xbf16>
    %c0_6 = arith.constant 0 : index
    %c0_7 = arith.constant 0 : index
    %9 = vector.load %arg4[%c0_6, %c0_7] : memref<16x16xbf16, #tpu.memory_space<vmem>>, vector<16x16xbf16>
    tpu.vector_store %arg4[%c0_6, %c0_7], %8 {strides = array<i32>} : memref<16x16xbf16, #tpu.memory_space<vmem>>, vector<16x16xbf16>,
    return
  }
  func.func @transform_0(%arg0: i32) -> (i32, i32) {
    %c0_i32 = arith.constant 0 : i32
    %c0_i32_0 = arith.constant 0 : i32
    %c0_i32_1 = arith.constant 0 : i32
    return %c0_i32, %c0_i32_0 : i32, i32
  }
  func.func @transform_1(%arg0: i32) -> (i32, i32) {
    %c0_i32 = arith.constant 0 : i32
    %c0_i32_0 = arith.constant 0 : i32
    %c0_i32_1 = arith.constant 0 : i32
    return %c0_i32, %c0_i32_0 : i32, i32
  }
  func.func @transform_2(%arg0: i32) -> (i32, i32) {
    %c0_i32 = arith.constant 0 : i32
    %c0_i32_0 = arith.constant 0 : i32
    return %c0_i32, %arg0 : i32, i32
  }
  func.func @transform_3(%arg0: i32) -> (i32, i32) {
    %c0_i32 = arith.constant 0 : i32
    %c0_i32_0 = arith.constant 0 : i32
    return %c0_i32, %arg0 : i32, i32
  }
}

module attributes {stable_mosaic.version = 11 : i64} {
  func.func @_conv_matmul_kernel(%arg0: i32, %arg1: memref<16x48xbf16, #tpu.memory_space<vmem>>, %arg2: memref<16x1xf32, #tpu.memory_space<vmem>>, %arg3: memref<48x8xbf16, #tpu.memory_space<vmem>>, %arg4: memref<16x8xbf16, #tpu.memory_space<vmem>>) attributes {dimension_semantics = [#tpu.dimension_semantics<parallel>], iteration_bounds = array<i64: 1>, scalar_prefetch = 0 : i64, scratch_operands = 0 : i64, tpu.core_type = #tpu.core_type<tc>, window_params = [{pipeline_mode = #tpu.pipeline_mode<synchronous>, transform_indices = @transform_0, window_bounds = array<i64: 16, 48>}, {pipeline_mode = #tpu.pipeline_mode<synchronous>, transform_indices = @transform_1, window_bounds = array<i64: 16, 1>}, {transform_indices = @transform_2, window_bounds = array<i64: 48, 8>}, {transform_indices = @transform_3, window_bounds = array<i64: 16, 8>}]} {
    %c0 = arith.constant 0 : index
    %c0_0 = arith.constant 0 : index
    %0 = vector.load %arg1[%c0, %c0_0] : memref<16x48xbf16, #tpu.memory_space<vmem>>, vector<16x48xbf16>
    %c0_1 = arith.constant 0 : index
    %c0_2 = arith.constant 0 : index
    %1 = vector.load %arg3[%c0_1, %c0_2] : memref<48x8xbf16, #tpu.memory_space<vmem>>, vector<48x8xbf16>
    %cst = arith.constant dense<0.000000e+00> : vector<16x8xf32>
    %2 = tpu.matmul %0, %1, %cst {dimension_numbers = #tpu.dot_dimension_numbers<[1], [0], [0], [1], [0, 0, 1, 1], [], []>} : vector<16x48xbf16>, vector<48x8xbf16>, vector<16x8xf32> -> vector<16x8xf32>
    %c0_3 = arith.constant 0 : index
    %c0_4 = arith.constant 0 : index
    %3 = vector.load %arg2[%c0_3, %c0_4] : memref<16x1xf32, #tpu.memory_space<vmem>>, vector<16x1xf32>
    %4 = vector.broadcast %3 : vector<16x1xf32> to vector<16x8xf32>
    %5 = arith.addf %2, %4 : vector<16x8xf32>
    %cst_5 = arith.constant 0.000000e+00 : f32
    %6 = vector.broadcast %cst_5 : f32 to vector<16x8xf32>
    %7 = arith.maximumf %5, %6 : vector<16x8xf32>
    %8 = arith.truncf %7 : vector<16x8xf32> to vector<16x8xbf16>
    %c0_6 = arith.constant 0 : index
    %c0_7 = arith.constant 0 : index
    %9 = vector.load %arg4[%c0_6, %c0_7] : memref<16x8xbf16, #tpu.memory_space<vmem>>, vector<16x8xbf16>
    tpu.vector_store %arg4[%c0_6, %c0_7], %8 {strides = array<i32>} : memref<16x8xbf16, #tpu.memory_space<vmem>>, vector<16x8xbf16>,
    return
  }
  func.func @transform_0(%arg0: i32) -> (i32, i32) {
    %c0_i32 = arith.constant 0 : i32
    %c0_i32_0 = arith.constant 0 : i32
    %c0_i32_1 = arith.constant 0 : i32
    return %c0_i32, %c0_i32_0 : i32, i32
  }
  func.func @transform_1(%arg0: i32) -> (i32, i32) {
    %c0_i32 = arith.constant 0 : i32
    %c0_i32_0 = arith.constant 0 : i32
    %c0_i32_1 = arith.constant 0 : i32
    return %c0_i32, %c0_i32_0 : i32, i32
  }
  func.func @transform_2(%arg0: i32) -> (i32, i32) {
    %c0_i32 = arith.constant 0 : i32
    %c0_i32_0 = arith.constant 0 : i32
    return %c0_i32, %arg0 : i32, i32
  }
  func.func @transform_3(%arg0: i32) -> (i32, i32) {
    %c0_i32 = arith.constant 0 : i32
    %c0_i32_0 = arith.constant 0 : i32
    return %c0_i32, %arg0 : i32, i32
  }
}

module attributes {stable_mosaic.version = 11 : i64} {
  func.func @_head_kernel(%arg0: i32, %arg1: memref<2x64xbf16, #tpu.memory_space<vmem>>, %arg2: memref<64x64xbf16, #tpu.memory_space<vmem>>, %arg3: memref<64x64xbf16, #tpu.memory_space<vmem>>, %arg4: memref<1x64xf32, #tpu.memory_space<vmem>>, %arg5: memref<1x64xf32, #tpu.memory_space<vmem>>, %arg6: memref<2x64xf32, #tpu.memory_space<vmem>>, %arg7: memref<2x64xf32, #tpu.memory_space<vmem>>, %arg8: memref<2x64xf32, #tpu.memory_space<vmem>>, %arg9: memref<2x64xf32, #tpu.memory_space<vmem>>) attributes {dimension_semantics = [#tpu.dimension_semantics<parallel>], iteration_bounds = array<i64: 1>, scalar_prefetch = 0 : i64, scratch_operands = 0 : i64, tpu.core_type = #tpu.core_type<tc>, window_params = [{pipeline_mode = #tpu.pipeline_mode<synchronous>, transform_indices = @transform_0, window_bounds = array<i64: 2, 64>}, {transform_indices = @transform_1, window_bounds = array<i64: 64, 64>}, {transform_indices = @transform_2, window_bounds = array<i64: 64, 64>}, {transform_indices = @transform_3, window_bounds = array<i64: 1, 64>}, {transform_indices = @transform_4, window_bounds = array<i64: 1, 64>}, {transform_indices = @transform_5, window_bounds = array<i64: 2, 64>}, {transform_indices = @transform_6, window_bounds = array<i64: 2, 64>}, {transform_indices = @transform_7, window_bounds = array<i64: 2, 64>}, {transform_indices = @transform_8, window_bounds = array<i64: 2, 64>}]} {
    %c0 = arith.constant 0 : index
    %c0_0 = arith.constant 0 : index
    %0 = vector.load %arg1[%c0, %c0_0] : memref<2x64xbf16, #tpu.memory_space<vmem>>, vector<2x64xbf16>
    %c0_1 = arith.constant 0 : index
    %c0_2 = arith.constant 0 : index
    %1 = vector.load %arg2[%c0_1, %c0_2] : memref<64x64xbf16, #tpu.memory_space<vmem>>, vector<64x64xbf16>
    %cst = arith.constant dense<0.000000e+00> : vector<2x64xf32>
    %2 = tpu.matmul %0, %1, %cst {dimension_numbers = #tpu.dot_dimension_numbers<[1], [0], [0], [1], [0, 0, 1, 1], [], []>} : vector<2x64xbf16>, vector<64x64xbf16>, vector<2x64xf32> -> vector<2x64xf32>
    %c0_3 = arith.constant 0 : index
    %c0_4 = arith.constant 0 : index
    %3 = vector.load %arg4[%c0_3, %c0_4] : memref<1x64xf32, #tpu.memory_space<vmem>>, vector<1x64xf32>
    %4 = vector.broadcast %3 : vector<1x64xf32> to vector<2x64xf32>
    %5 = arith.addf %2, %4 : vector<2x64xf32>
    %c0_5 = arith.constant 0 : index
    %c0_6 = arith.constant 0 : index
    %6 = vector.load %arg3[%c0_5, %c0_6] : memref<64x64xbf16, #tpu.memory_space<vmem>>, vector<64x64xbf16>
    %cst_7 = arith.constant dense<0.000000e+00> : vector<2x64xf32>
    %7 = tpu.matmul %0, %6, %cst_7 {dimension_numbers = #tpu.dot_dimension_numbers<[1], [0], [0], [1], [0, 0, 1, 1], [], []>} : vector<2x64xbf16>, vector<64x64xbf16>, vector<2x64xf32> -> vector<2x64xf32>
    %c0_8 = arith.constant 0 : index
    %c0_9 = arith.constant 0 : index
    %8 = vector.load %arg5[%c0_8, %c0_9] : memref<1x64xf32, #tpu.memory_space<vmem>>, vector<1x64xf32>
    %9 = vector.broadcast %8 : vector<1x64xf32> to vector<2x64xf32>
    %10 = arith.addf %7, %9 : vector<2x64xf32>
    %c0_10 = arith.constant 0 : index
    %c0_11 = arith.constant 0 : index
    %11 = vector.load %arg7[%c0_10, %c0_11] : memref<2x64xf32, #tpu.memory_space<vmem>>, vector<2x64xf32>
    tpu.vector_store %arg7[%c0_10, %c0_11], %5 {strides = array<i32>} : memref<2x64xf32, #tpu.memory_space<vmem>>, vector<2x64xf32>,
    %c0_12 = arith.constant 0 : index
    %c0_13 = arith.constant 0 : index
    %12 = vector.load %arg8[%c0_12, %c0_13] : memref<2x64xf32, #tpu.memory_space<vmem>>, vector<2x64xf32>
    tpu.vector_store %arg8[%c0_12, %c0_13], %10 {strides = array<i32>} : memref<2x64xf32, #tpu.memory_space<vmem>>, vector<2x64xf32>,
    %cst_14 = arith.constant 5.000000e-01 : f32
    %13 = vector.broadcast %cst_14 : f32 to vector<2x64xf32>
    %14 = arith.mulf %13, %10 : vector<2x64xf32>
    %15 = math.exp %14 : vector<2x64xf32>
    %c0_15 = arith.constant 0 : index
    %c0_16 = arith.constant 0 : index
    %16 = vector.load %arg6[%c0_15, %c0_16] : memref<2x64xf32, #tpu.memory_space<vmem>>, vector<2x64xf32>
    %17 = arith.mulf %15, %16 : vector<2x64xf32>
    %18 = arith.addf %5, %17 : vector<2x64xf32>
    %c0_17 = arith.constant 0 : index
    %c0_18 = arith.constant 0 : index
    %19 = vector.load %arg9[%c0_17, %c0_18] : memref<2x64xf32, #tpu.memory_space<vmem>>, vector<2x64xf32>
    tpu.vector_store %arg9[%c0_17, %c0_18], %18 {strides = array<i32>} : memref<2x64xf32, #tpu.memory_space<vmem>>, vector<2x64xf32>,
    return
  }
  func.func @transform_0(%arg0: i32) -> (i32, i32) {
    %c0_i32 = arith.constant 0 : i32
    %c0_i32_0 = arith.constant 0 : i32
    %c0_i32_1 = arith.constant 0 : i32
    return %c0_i32, %c0_i32_0 : i32, i32
  }
  func.func @transform_1(%arg0: i32) -> (i32, i32) {
    %c0_i32 = arith.constant 0 : i32
    %c0_i32_0 = arith.constant 0 : i32
    return %c0_i32, %arg0 : i32, i32
  }
  func.func @transform_2(%arg0: i32) -> (i32, i32) {
    %c0_i32 = arith.constant 0 : i32
    %c0_i32_0 = arith.constant 0 : i32
    return %c0_i32, %arg0 : i32, i32
  }
  func.func @transform_3(%arg0: i32) -> (i32, i32) {
    %c0_i32 = arith.constant 0 : i32
    %c0_i32_0 = arith.constant 0 : i32
    return %c0_i32, %arg0 : i32, i32
  }
  func.func @transform_4(%arg0: i32) -> (i32, i32) {
    %c0_i32 = arith.constant 0 : i32
    %c0_i32_0 = arith.constant 0 : i32
    return %c0_i32, %arg0 : i32, i32
  }
  func.func @transform_5(%arg0: i32) -> (i32, i32) {
    %c0_i32 = arith.constant 0 : i32
    %c0_i32_0 = arith.constant 0 : i32
    return %c0_i32, %arg0 : i32, i32
  }
  func.func @transform_6(%arg0: i32) -> (i32, i32) {
    %c0_i32 = arith.constant 0 : i32
    %c0_i32_0 = arith.constant 0 : i32
    return %c0_i32, %arg0 : i32, i32
  }
  func.func @transform_7(%arg0: i32) -> (i32, i32) {
    %c0_i32 = arith.constant 0 : i32
    %c0_i32_0 = arith.constant 0 : i32
    return %c0_i32, %arg0 : i32, i32
  }
  func.func @transform_8(%arg0: i32) -> (i32, i32) {
    %c0_i32 = arith.constant 0 : i32
    %c0_i32_0 = arith.constant 0 : i32
    return %c0_i32, %arg0 : i32, i32
  }
}

</mosaic_0001>

<llo_original>
// kernel: encoder_forward.7
$region0: #{encoder_forward.7}
  #allocation0 [shape = 'u32[]', space=smem, size = 0x4, offset = 0x4, fixed_abs, tag = 'smem constant byte address 0x4 - core index']
  #allocation1 [shape = 'u32[72,128]{1,0:T(1,128)}', space=vmem, size = 0x9000, scoped, tag = 'internal scratch']
  %s0 = inlined_call_operand.vmem [shape: bf16[4,27], index: 0, kind: input, shape index: {}]
  %s1 = inlined_call_operand.vmem [shape: f32[4,1], index: 1, kind: input, shape index: {}]
  %s2 = inlined_call_operand.vmem [shape: bf16[27,1024], index: 2, kind: input, shape index: {}]
  %s3 = inlined_call_operand.vmem [shape: bf16[4,1024], index: 3, kind: output, shape index: {}]
  %s4 = sld [smem:[#allocation0]]
  $region22: #{encoder_forward.7} parent=0
    _
  %s6 = ssub.s32 1, %s4
  %s7 = scalar_select 0, %s6, %s4
  // Predicated region
  $region2: #{encoder_forward.7} parent=0 // pred_check
    _
  $region3: #{encoder_forward.7} parent=0 // pred_check_branch
    %9 = sbr.rel (0) target = $region5
  $region4: #{encoder_forward.7} parent=0 // pred_region
    _
  $region5: #{encoder_forward.7} parent=0 // pred_fallthru
    _
  // Predicated region
  $region6: #{encoder_forward.7} parent=0 // pred_check
    _
  $region7: #{encoder_forward.7} parent=0 // pred_check_branch
    %11 = sbr.rel (0) target = $region9
  $region8: #{encoder_forward.7} parent=0 // pred_region
    _
  $region9: #{encoder_forward.7} parent=0 // pred_fallthru
    _
  // Predicated region
  $region10: #{encoder_forward.7} parent=0 // pred_check
    _
  $region11: #{encoder_forward.7} parent=0 // pred_check_branch
    %13 = sbr.rel (0) target = $region13
  $region12: #{encoder_forward.7} parent=0 // pred_region
    _
  $region13: #{encoder_forward.7} parent=0 // pred_fallthru
    _
  %v15 = vld [vmem:[%s0] sm:$0x3]
  %v16 = vld [vmem:[%s2] sm:$0xff]
  %v17 = vld [vmem:[%s2 + $0x8] sm:$0xff]
  %v18 = vld [vmem:[%s2 + $0x10] sm:$0xff]
  %v19 = vld [vmem:[%s2 + $0x18] sm:$0xff]
  %v20 = vld [vmem:[%s2 + $0x20] sm:$0xff]
  %v21 = vld [vmem:[%s2 + $0x28] sm:$0xff]
  %v22 = vld [vmem:[%s2 + $0x30] sm:$0xff]
  %v23 = vld [vmem:[%s2 + $0x38] sm:$0xff]
  %v24 = vld [vmem:[%s2 + $0x40] sm:$0xff]
  %v25 = vld [vmem:[%s2 + $0x48] sm:$0xff]
  %v26 = vld [vmem:[%s2 + $0x50] sm:$0xff]
  %v27 = vld [vmem:[%s2 + $0x58] sm:$0xff]
  %v28 = vld [vmem:[%s2 + $0x60] sm:$0x33]
  %v29 = vld [vmem:[%s2 + $0x68] sm:$0x33]
  %v30 = vld [vmem:[%s2 + $0x70] sm:$0x33]
  %v31 = vld [vmem:[%s2 + $0x78] sm:$0x33]
  %v32 = vld [vmem:[%s1] sm:$0xf]
  %34 = vset.pattern.permute.xlu0 0
  %35 = vperm.xlu0 %34, %v32
  %v36 = vpop.permute.xlu0 %35
  %v54 = vunpack.c.l.b16 %v16
  %v55 = vunpack.c.h.b16 %v16
  %v56 = vunpack.c.l.b16 %v17
  %v57 = vunpack.c.h.b16 %v17
  %v58 = vunpack.c.l.b16 %v18
  %v59 = vunpack.c.h.b16 %v18
  %v60 = vunpack.c.l.b16 %v19
  %v61 = vunpack.c.h.b16 %v19
  %v62 = vunpack.c.l.b16 %v20
  %v63 = vunpack.c.h.b16 %v20
  %v64 = vunpack.c.l.b16 %v21
  %v65 = vunpack.c.h.b16 %v21
  %v66 = vunpack.c.l.b16 %v22
  %v67 = vunpack.c.h.b16 %v22
  %v68 = vunpack.c.l.b16 %v23
  %v69 = vunpack.c.h.b16 %v23
  %v70 = vunpack.c.l.b16 %v24
  %v71 = vunpack.c.h.b16 %v24
  %v72 = vunpack.c.l.b16 %v25
  %v73 = vunpack.c.h.b16 %v25
  %v74 = vunpack.c.l.b16 %v26
  %v75 = vunpack.c.h.b16 %v26
  %v76 = vunpack.c.l.b16 %v27
  %v77 = vunpack.c.h.b16 %v27
  %v78 = vunpack.c.l.b16 %v28
  %v79 = vunpack.c.h.b16 %v28
  %v80 = vunpack.c.l.b16 %v29
  %v81 = vunpack.c.h.b16 %v29
  %v82 = vunpack.c.l.b16 %v30
  %v83 = vunpack.c.h.b16 %v30
  %v84 = vunpack.c.l.b16 %v31
  %v85 = vunpack.c.h.b16 %v31
  %v86 = vpack.c.b16 %v62, %v54
  %v87 = vpack.c.b16 %v63, %v55
  %v88 = vpack.c.b16 %v64, %v56
  %v89 = vpack.c.b16 %v65, %v57
  %v90 = vpack.c.b16 %v66, %v58
  %v91 = vpack.c.b16 %v67, %v59
  %v92 = vpack.c.b16 %v68, %v60
  %v93 = vpack.c.b16 %v69, %v61
  %v94 = vpack.c.b16 %v78, %v70
  %v95 = vpack.c.b16 %v79, %v71
  %v96 = vpack.c.b16 %v80, %v72
  %v97 = vpack.c.b16 %v81, %v73
  %v98 = vpack.c.b16 %v82, %v74
  %v99 = vpack.c.b16 %v83, %v75
  %v100 = vpack.c.b16 %v84, %v76
  %v101 = vpack.c.b16 %v85, %v77
  %vm110 = vcmask 220160
  %v112 = vsel %vm110, %v15, 0
  %vm114 = vcmask 1044480
  %vm115 = vcmask 1045504
  %v116 = vsel %vm114, 4294967295, 65535
  %v117 = vsel %vm115, %v116, 0
  %v119 = vand.u32 %v94, %v117
  %v122 = vand.u32 %v95, %v117
  %v125 = vand.u32 %v96, %v117
  %v128 = vand.u32 %v97, %v117
  %v131 = vand.u32 %v98, %v117
  %v134 = vand.u32 %v99, %v117
  %v137 = vand.u32 %v100, %v117
  %v140 = vand.u32 %v101, %v117
  %142 = vmatpush.bf16.msra.mxu0 0
  %143 = vmatpush.bf16.msra.mxu0 0
  %144 = vmatpush.bf16.msra.mxu0 0
  %145 = vmatpush.bf16.msra.mxu0 0
  %146 = vmatpush.bf16.msra.mxu0 0
  %147 = vmatpush.bf16.msra.mxu0 0
  %148 = vmatpush.bf16.msra.mxu0 %v119
  %149 = vmatpush.bf16.msra.mxu0 %v86
  %150 = vmatmul.bf16.gmra.mxu0 %v112
  %v151 = vpop.f32.mrf.mxu0
  %v152 = vadd.f32 %v36, %v151
  %v153 = vpop.f32.mrf.mxu0
  %154 = vdwg.mxu0
  %155 = vmatpush.bf16.msra.mxu0 0
  %156 = vmatpush.bf16.msra.mxu0 0
  %157 = vmatpush.bf16.msra.mxu0 0
  %158 = vmatpush.bf16.msra.mxu0 0
  %159 = vmatpush.bf16.msra.mxu0 0
  %160 = vmatpush.bf16.msra.mxu0 0
  %161 = vmatpush.bf16.msra.mxu0 %v122
  %162 = vmatpush.bf16.msra.mxu0 %v87
  %163 = vmatmul.bf16.gmra.mxu0 %v112
  %v164 = vpop.f32.mrf.mxu0
  %v165 = vadd.f32 %v36, %v164
  %v166 = vpop.f32.mrf.mxu0
  %167 = vdwg.mxu0
  %168 = vmatpush.bf16.msra.mxu0 0
  %169 = vmatpush.bf16.msra.mxu0 0
  %170 = vmatpush.bf16.msra.mxu0 0
  %171 = vmatpush.bf16.msra.mxu0 0
  %172 = vmatpush.bf16.msra.mxu0 0
  %173 = vmatpush.bf16.msra.mxu0 0
  %174 = vmatpush.bf16.msra.mxu0 %v125
  %175 = vmatpush.bf16.msra.mxu0 %v88
  %176 = vmatmul.bf16.gmra.mxu0 %v112
  %v177 = vpop.f32.mrf.mxu0
  %v178 = vadd.f32 %v36, %v177
  %v179 = vpop.f32.mrf.mxu0
  %180 = vdwg.mxu0
  %181 = vmatpush.bf16.msra.mxu0 0
  %182 = vmatpush.bf16.msra.mxu0 0
  %183 = vmatpush.bf16.msra.mxu0 0
  %184 = vmatpush.bf16.msra.mxu0 0
  %185 = vmatpush.bf16.msra.mxu0 0
  %186 = vmatpush.bf16.msra.mxu0 0
  %187 = vmatpush.bf16.msra.mxu0 %v128
  %188 = vmatpush.bf16.msra.mxu0 %v89
  %189 = vmatmul.bf16.gmra.mxu0 %v112
  %v190 = vpop.f32.mrf.mxu0
  %v191 = vadd.f32 %v36, %v190
  %v192 = vpop.f32.mrf.mxu0
  %193 = vdwg.mxu0
  %194 = vmatpush.bf16.msra.mxu0 0
  %195 = vmatpush.bf16.msra.mxu0 0
  %196 = vmatpush.bf16.msra.mxu0 0
  %197 = vmatpush.bf16.msra.mxu0 0
  %198 = vmatpush.bf16.msra.mxu0 0
  %199 = vmatpush.bf16.msra.mxu0 0
  %200 = vmatpush.bf16.msra.mxu0 %v131
  %201 = vmatpush.bf16.msra.mxu0 %v90
  %202 = vmatmul.bf16.gmra.mxu0 %v112
  %v203 = vpop.f32.mrf.mxu0
  %v204 = vadd.f32 %v36, %v203
  %v205 = vpop.f32.mrf.mxu0
  %206 = vdwg.mxu0
  %207 = vmatpush.bf16.msra.mxu0 0
  %208 = vmatpush.bf16.msra.mxu0 0
  %209 = vmatpush.bf16.msra.mxu0 0
  %210 = vmatpush.bf16.msra.mxu0 0
  %211 = vmatpush.bf16.msra.mxu0 0
  %212 = vmatpush.bf16.msra.mxu0 0
  %213 = vmatpush.bf16.msra.mxu0 %v134
  %214 = vmatpush.bf16.msra.mxu0 %v91
  %215 = vmatmul.bf16.gmra.mxu0 %v112
  %v216 = vpop.f32.mrf.mxu0
  %v217 = vadd.f32 %v36, %v216
  %v218 = vpop.f32.mrf.mxu0
  %219 = vdwg.mxu0
  %220 = vmatpush.bf16.msra.mxu0 0
  %221 = vmatpush.bf16.msra.mxu0 0
  %222 = vmatpush.bf16.msra.mxu0 0
  %223 = vmatpush.bf16.msra.mxu0 0
  %224 = vmatpush.bf16.msra.mxu0 0
  %225 = vmatpush.bf16.msra.mxu0 0
  %226 = vmatpush.bf16.msra.mxu0 %v137
  %227 = vmatpush.bf16.msra.mxu0 %v92
  %228 = vmatmul.bf16.gmra.mxu0 %v112
  %v229 = vpop.f32.mrf.mxu0
  %v230 = vadd.f32 %v36, %v229
  %v231 = vpop.f32.mrf.mxu0
  %232 = vdwg.mxu0
  %233 = vmatpush.bf16.msra.mxu0 0
  %234 = vmatpush.bf16.msra.mxu0 0
  %235 = vmatpush.bf16.msra.mxu0 0
  %236 = vmatpush.bf16.msra.mxu0 0
  %237 = vmatpush.bf16.msra.mxu0 0
  %238 = vmatpush.bf16.msra.mxu0 0
  %239 = vmatpush.bf16.msra.mxu0 %v140
  %240 = vmatpush.bf16.msra.mxu0 %v93
  %241 = vmatmul.bf16.gmra.mxu0 %v112
  %v242 = vpop.f32.mrf.mxu0
  %v243 = vadd.f32 %v36, %v242
  %v244 = vpop.f32.mrf.mxu0
  %245 = vdwg.mxu0
  %v246 = vmax.f32 %v152, 0.0
  %v247 = vmax.f32 %v165, 0.0
  %v248 = vmax.f32 %v178, 0.0
  %v249 = vmax.f32 %v191, 0.0
  %v250 = vmax.f32 %v204, 0.0
  %v251 = vmax.f32 %v217, 0.0
  %v252 = vmax.f32 %v230, 0.0
  %v253 = vmax.f32 %v243, 0.0
  %v254 = vpack.c.bf16 %v247, %v246
  %v255 = vpack.c.bf16 %v249, %v248
  %v256 = vpack.c.bf16 %v251, %v250
  %v257 = vpack.c.bf16 %v253, %v252
  %v262 = vrot.slane %v254, 2
  %v263 = vrot.slane %v255, 4
  %v264 = vrot.slane %v255, 6
  %v265 = vrot.slane %v256, 2
  %v266 = vrot.slane %v257, 4
  %v267 = vrot.slane %v257, 6
  %vm268 = vcmask 1041408
  %v271 = vsel %vm268, %v254, %v262
  %vm272 = vcmask 1045508
  %v275 = vsel %vm272, %v263, %v264
  %vm276 = vcmask 1043456
  %v277 = vsel %vm276, %v271, %v275
  %v280 = vsel %vm268, %v256, %v265
  %v283 = vsel %vm272, %v266, %v267
  %v284 = vsel %vm276, %v280, %v283
  %287 = vst [vmem:[%s3] sm:$0xff] %v277
  %288 = vst [vmem:[%s3 + $0x8] sm:$0xff] %v284
  // Predicated region
  $region14: #{encoder_forward.7} parent=0 // pred_check
    _
  $region15: #{encoder_forward.7} parent=0 // pred_check_branch
    %290 = sbr.rel (0) target = $region17
  $region16: #{encoder_forward.7} parent=0 // pred_region
    _
  $region17: #{encoder_forward.7} parent=0 // pred_fallthru
    _
  // Predicated region
  $region18: #{encoder_forward.7} parent=0 // pred_check
    _
  $region19: #{encoder_forward.7} parent=0 // pred_check_branch
    %292 = sbr.rel (0) target = $region21
  $region20: #{encoder_forward.7} parent=0 // pred_region
    _
  $region21: #{encoder_forward.7} parent=0 // pred_fallthru
    _

// kernel: encoder_forward.8
$region0: #{encoder_forward.8}
  #allocation0 [shape = 'u32[]', space=smem, size = 0x4, offset = 0x4, fixed_abs, tag = 'smem constant byte address 0x4 - core index']
  #allocation1 [shape = 'u32[72,128]{1,0:T(1,128)}', space=vmem, size = 0x9000, scoped, tag = 'internal scratch']
  %s0 = inlined_call_operand.vmem [shape: bf16[4,12], index: 0, kind: input, shape index: {}]
  %s1 = inlined_call_operand.vmem [shape: f32[4,1], index: 1, kind: input, shape index: {}]
  %s2 = inlined_call_operand.vmem [shape: bf16[12,512], index: 2, kind: input, shape index: {}]
  %s3 = inlined_call_operand.vmem [shape: bf16[4,512], index: 3, kind: output, shape index: {}]
  %s4 = sld [smem:[#allocation0]]
  $region22: #{encoder_forward.8} parent=0
    _
  %s6 = ssub.s32 1, %s4
  %s7 = scalar_select 0, %s6, %s4
  // Predicated region
  $region2: #{encoder_forward.8} parent=0 // pred_check
    _
  $region3: #{encoder_forward.8} parent=0 // pred_check_branch
    %9 = sbr.rel (0) target = $region5
  $region4: #{encoder_forward.8} parent=0 // pred_region
    _
  $region5: #{encoder_forward.8} parent=0 // pred_fallthru
    _
  // Predicated region
  $region6: #{encoder_forward.8} parent=0 // pred_check
    _
  $region7: #{encoder_forward.8} parent=0 // pred_check_branch
    %11 = sbr.rel (0) target = $region9
  $region8: #{encoder_forward.8} parent=0 // pred_region
    _
  $region9: #{encoder_forward.8} parent=0 // pred_fallthru
    _
  // Predicated region
  $region10: #{encoder_forward.8} parent=0 // pred_check
    _
  $region11: #{encoder_forward.8} parent=0 // pred_check_branch
    %13 = sbr.rel (0) target = $region13
  $region12: #{encoder_forward.8} parent=0 // pred_region
    _
  $region13: #{encoder_forward.8} parent=0 // pred_fallthru
    _
  %v15 = vld [vmem:[%s0] sm:$0x3]
  %v16 = vld [vmem:[%s2] sm:$0xff]
  %v17 = vld [vmem:[%s2 + $0x8] sm:$0xff]
  %v18 = vld [vmem:[%s2 + $0x10] sm:$0x33]
  %v19 = vld [vmem:[%s2 + $0x18] sm:$0x33]
  %v20 = vld [vmem:[%s1] sm:$0xf]
  %22 = vset.pattern.permute.xlu0 0
  %23 = vperm.xlu0 %22, %v20
  %v24 = vpop.permute.xlu0 %23
  %v30 = vunpack.c.l.b16 %v16
  %v31 = vunpack.c.h.b16 %v16
  %v32 = vunpack.c.l.b16 %v17
  %v33 = vunpack.c.h.b16 %v17
  %v34 = vunpack.c.l.b16 %v18
  %v35 = vunpack.c.h.b16 %v18
  %v36 = vunpack.c.l.b16 %v19
  %v37 = vunpack.c.h.b16 %v19
  %v38 = vpack.c.b16 %v34, %v30
  %v39 = vpack.c.b16 %v35, %v31
  %v40 = vpack.c.b16 %v36, %v32
  %v41 = vpack.c.b16 %v37, %v33
  %vm42 = vcmask 97280
  %v44 = vsel %vm42, %v15, 0
  %vm46 = vcmask 1045504
  %v48 = vsel %vm46, %v38, 0
  %v51 = vsel %vm46, %v39, 0
  %v54 = vsel %vm46, %v40, 0
  %v57 = vsel %vm46, %v41, 0
  %59 = vmatpush.bf16.msra.mxu0 0
  %60 = vmatpush.bf16.msra.mxu0 0
  %61 = vmatpush.bf16.msra.mxu0 0
  %62 = vmatpush.bf16.msra.mxu0 0
  %63 = vmatpush.bf16.msra.mxu0 0
  %64 = vmatpush.bf16.msra.mxu0 0
  %65 = vmatpush.bf16.msra.mxu0 0
  %66 = vmatpush.bf16.msra.mxu0 %v48
  %67 = vmatmul.bf16.gmra.mxu0 %v44
  %v68 = vpop.f32.mrf.mxu0
  %v69 = vadd.f32 %v24, %v68
  %v70 = vpop.f32.mrf.mxu0
  %71 = vdwg.mxu0
  %72 = vmatpush.bf16.msra.mxu0 0
  %73 = vmatpush.bf16.msra.mxu0 0
  %74 = vmatpush.bf16.msra.mxu0 0
  %75 = vmatpush.bf16.msra.mxu0 0
  %76 = vmatpush.bf16.msra.mxu0 0
  %77 = vmatpush.bf16.msra.mxu0 0
  %78 = vmatpush.bf16.msra.mxu0 0
  %79 = vmatpush.bf16.msra.mxu0 %v51
  %80 = vmatmul.bf16.gmra.mxu0 %v44
  %v81 = vpop.f32.mrf.mxu0
  %v82 = vadd.f32 %v24, %v81
  %v83 = vpop.f32.mrf.mxu0
  %84 = vdwg.mxu0
  %85 = vmatpush.bf16.msra.mxu0 0
  %86 = vmatpush.bf16.msra.mxu0 0
  %87 = vmatpush.bf16.msra.mxu0 0
  %88 = vmatpush.bf16.msra.mxu0 0
  %89 = vmatpush.bf16.msra.mxu0 0
  %90 = vmatpush.bf16.msra.mxu0 0
  %91 = vmatpush.bf16.msra.mxu0 0
  %92 = vmatpush.bf16.msra.mxu0 %v54
  %93 = vmatmul.bf16.gmra.mxu0 %v44
  %v94 = vpop.f32.mrf.mxu0
  %v95 = vadd.f32 %v24, %v94
  %v96 = vpop.f32.mrf.mxu0
  %97 = vdwg.mxu0
  %98 = vmatpush.bf16.msra.mxu0 0
  %99 = vmatpush.bf16.msra.mxu0 0
  %100 = vmatpush.bf16.msra.mxu0 0
  %101 = vmatpush.bf16.msra.mxu0 0
  %102 = vmatpush.bf16.msra.mxu0 0
  %103 = vmatpush.bf16.msra.mxu0 0
  %104 = vmatpush.bf16.msra.mxu0 0
  %105 = vmatpush.bf16.msra.mxu0 %v57
  %106 = vmatmul.bf16.gmra.mxu0 %v44
  %v107 = vpop.f32.mrf.mxu0
  %v108 = vadd.f32 %v24, %v107
  %v109 = vpop.f32.mrf.mxu0
  %110 = vdwg.mxu0
  %v111 = vmax.f32 %v69, 0.0
  %v112 = vmax.f32 %v82, 0.0
  %v113 = vmax.f32 %v95, 0.0
  %v114 = vmax.f32 %v108, 0.0
  %v115 = vpack.c.bf16 %v112, %v111
  %v116 = vpack.c.bf16 %v114, %v113
  %v119 = vrot.slane %v115, 2
  %v120 = vrot.slane %v116, 4
  %v121 = vrot.slane %v116, 6
  %vm122 = vcmask 1041408
  %v125 = vsel %vm122, %v115, %v119
  %vm126 = vcmask 1045508
  %v129 = vsel %vm126, %v120, %v121
  %vm130 = vcmask 1043456
  %v131 = vsel %vm130, %v125, %v129
  %133 = vst [vmem:[%s3] sm:$0xff] %v131
  // Predicated region
  $region14: #{encoder_forward.8} parent=0 // pred_check
    _
  $region15: #{encoder_forward.8} parent=0 // pred_check_branch
    %135 = sbr.rel (0) target = $region17
  $region16: #{encoder_forward.8} parent=0 // pred_region
    _
  $region17: #{encoder_forward.8} parent=0 // pred_fallthru
    _
  // Predicated region
  $region18: #{encoder_forward.8} parent=0 // pred_check
    _
  $region19: #{encoder_forward.8} parent=0 // pred_check_branch
    %137 = sbr.rel (0) target = $region21
  $region20: #{encoder_forward.8} parent=0 // pred_region
    _
  $region21: #{encoder_forward.8} parent=0 // pred_fallthru
    _

// kernel: encoder_forward.9
$region0: #{encoder_forward.9}
  #allocation0 [shape = 'u32[]', space=smem, size = 0x4, offset = 0x4, fixed_abs, tag = 'smem constant byte address 0x4 - core index']
  #allocation1 [shape = 'u32[72,128]{1,0:T(1,128)}', space=vmem, size = 0x9000, scoped, tag = 'internal scratch']
  %s0 = inlined_call_operand.vmem [shape: bf16[8,36], index: 0, kind: input, shape index: {}]
  %s1 = inlined_call_operand.vmem [shape: f32[8,1], index: 1, kind: input, shape index: {}]
  %s2 = inlined_call_operand.vmem [shape: bf16[36,128], index: 2, kind: input, shape index: {}]
  %s3 = inlined_call_operand.vmem [shape: bf16[8,128], index: 3, kind: output, shape index: {}]
  %s4 = sld [smem:[#allocation0]]
  $region22: #{encoder_forward.9} parent=0
    _
  %s6 = ssub.s32 1, %s4
  %s7 = scalar_select 0, %s6, %s4
  // Predicated region
  $region2: #{encoder_forward.9} parent=0 // pred_check
    _
  $region3: #{encoder_forward.9} parent=0 // pred_check_branch
    %9 = sbr.rel (0) target = $region5
  $region4: #{encoder_forward.9} parent=0 // pred_region
    _
  $region5: #{encoder_forward.9} parent=0 // pred_fallthru
    _
  // Predicated region
  $region6: #{encoder_forward.9} parent=0 // pred_check
    _
  $region7: #{encoder_forward.9} parent=0 // pred_check_branch
    %11 = sbr.rel (0) target = $region9
  $region8: #{encoder_forward.9} parent=0 // pred_region
    _
  $region9: #{encoder_forward.9} parent=0 // pred_fallthru
    _
  // Predicated region
  $region10: #{encoder_forward.9} parent=0 // pred_check
    _
  $region11: #{encoder_forward.9} parent=0 // pred_check_branch
    %13 = sbr.rel (0) target = $region13
  $region12: #{encoder_forward.9} parent=0 // pred_region
    _
  $region13: #{encoder_forward.9} parent=0 // pred_fallthru
    _
  %v15 = vld [vmem:[%s0] sm:$0xf]
  %v16 = vld [vmem:[%s2] sm:$0xf]
  %v17 = vld [vmem:[%s2 + $0x4] sm:$0xf]
  %v18 = vld [vmem:[%s2 + $0x8] sm:$0xf]
  %v19 = vld [vmem:[%s2 + $0xc] sm:$0xf]
  %v20 = vld [vmem:[%s2 + $0x10] sm:$0x3]
  %v21 = vld [vmem:[%s1] sm:$0xff]
  %23 = vset.pattern.permute.xlu0 0
  %24 = vperm.xlu0 %23, %v21
  %v25 = vpop.permute.xlu0 %24
  %v32 = vunpack.c.l.b16 %v16
  %v33 = vunpack.c.l.b16 %v17
  %v34 = vunpack.c.l.b16 %v18
  %v35 = vunpack.c.l.b16 %v19
  %v36 = vunpack.c.l.b16 %v20
  %v37 = vpack.c.b16 %v33, %v32
  %v38 = vpack.c.b16 %v35, %v34
  %v39 = vpack.c.b16 %v36, %v36
  %vm42 = vcmask 293888
  %v44 = vsel %vm42, %v15, 0
  %vm46 = vcmask 1041408
  %v48 = vsel %vm46, %v39, 0
  %50 = vmatpush.bf16.msra.mxu0 0
  %51 = vmatpush.bf16.msra.mxu0 0
  %52 = vmatpush.bf16.msra.mxu0 0
  %53 = vmatpush.bf16.msra.mxu0 0
  %54 = vmatpush.bf16.msra.mxu0 0
  %55 = vmatpush.bf16.msra.mxu0 %v48
  %56 = vmatpush.bf16.msra.mxu0 %v38
  %57 = vmatpush.bf16.msra.mxu0 %v37
  %58 = vmatmul.bf16.gmra.mxu0 %v44
  %v59 = vpop.f32.mrf.mxu0
  %v60 = vadd.f32 %v25, %v59
  %v61 = vpop.f32.mrf.mxu0
  %62 = vdwg.mxu0
  %v63 = vmax.f32 %v60, 0.0
  %v64 = vpack.c.bf16 %v63, %v63
  %65 = vst [vmem:[%s3] sm:$0xf] %v64
  // Predicated region
  $region14: #{encoder_forward.9} parent=0 // pred_check
    _
  $region15: #{encoder_forward.9} parent=0 // pred_check_branch
    %67 = sbr.rel (0) target = $region17
  $region16: #{encoder_forward.9} parent=0 // pred_region
    _
  $region17: #{encoder_forward.9} parent=0 // pred_fallthru
    _
  // Predicated region
  $region18: #{encoder_forward.9} parent=0 // pred_check
    _
  $region19: #{encoder_forward.9} parent=0 // pred_check_branch
    %69 = sbr.rel (0) target = $region21
  $region20: #{encoder_forward.9} parent=0 // pred_region
    _
  $region21: #{encoder_forward.9} parent=0 // pred_fallthru
    _

// kernel: encoder_forward.10
$region0: #{encoder_forward.10}
  #allocation0 [shape = 'u32[]', space=smem, size = 0x4, offset = 0x4, fixed_abs, tag = 'smem constant byte address 0x4 - core index']
  #allocation1 [shape = 'u32[72,128]{1,0:T(1,128)}', space=vmem, size = 0x9000, scoped, tag = 'internal scratch']
  %s0 = inlined_call_operand.vmem [shape: bf16[8,24], index: 0, kind: input, shape index: {}]
  %s1 = inlined_call_operand.vmem [shape: f32[8,1], index: 1, kind: input, shape index: {}]
  %s2 = inlined_call_operand.vmem [shape: bf16[24,64], index: 2, kind: input, shape index: {}]
  %s3 = inlined_call_operand.vmem [shape: bf16[8,64], index: 3, kind: output, shape index: {}]
  %s4 = sld [smem:[#allocation0]]
  $region22: #{encoder_forward.10} parent=0
    _
  %s6 = ssub.s32 1, %s4
  %s7 = scalar_select 0, %s6, %s4
  // Predicated region
  $region2: #{encoder_forward.10} parent=0 // pred_check
    _
  $region3: #{encoder_forward.10} parent=0 // pred_check_branch
    %9 = sbr.rel (0) target = $region5
  $region4: #{encoder_forward.10} parent=0 // pred_region
    _
  $region5: #{encoder_forward.10} parent=0 // pred_fallthru
    _
  // Predicated region
  $region6: #{encoder_forward.10} parent=0 // pred_check
    _
  $region7: #{encoder_forward.10} parent=0 // pred_check_branch
    %11 = sbr.rel (0) target = $region9
  $region8: #{encoder_forward.10} parent=0 // pred_region
    _
  $region9: #{encoder_forward.10} parent=0 // pred_fallthru
    _
  // Predicated region
  $region10: #{encoder_forward.10} parent=0 // pred_check
    _
  $region11: #{encoder_forward.10} parent=0 // pred_check_branch
    %13 = sbr.rel (0) target = $region13
  $region12: #{encoder_forward.10} parent=0 // pred_region
    _
  $region13: #{encoder_forward.10} parent=0 // pred_fallthru
    _
  %v15 = vld [vmem:[%s0] sm:$0xf]
  %v16 = vld [vmem:[%s2] sm:$0xf]
  %v17 = vld [vmem:[%s2 + $0x4] sm:$0xf]
  %v18 = vld [vmem:[%s2 + $0x8] sm:$0xf]
  %v19 = vld [vmem:[%s1] sm:$0xff]
  %21 = vset.pattern.permute.xlu0 0
  %22 = vperm.xlu0 %21, %v19
  %v23 = vpop.permute.xlu0 %22
  %v28 = vunpack.c.l.b16 %v16
  %v29 = vunpack.c.l.b16 %v17
  %v30 = vunpack.c.l.b16 %v18
  %v31 = vpack.c.b16 %v29, %v28
  %v32 = vpack.c.b16 %v30, %v30
  %vm34 = vcmask 195584
  %v36 = vsel %vm34, %v15, 0
  %vm38 = vcmask 1043456
  %v40 = vsel %vm38, %v32, 0
  %42 = vmatpush.bf16.msra.mxu0 0
  %43 = vmatpush.bf16.msra.mxu0 0
  %44 = vmatpush.bf16.msra.mxu0 0
  %45 = vmatpush.bf16.msra.mxu0 0
  %46 = vmatpush.bf16.msra.mxu0 0
  %47 = vmatpush.bf16.msra.mxu0 0
  %48 = vmatpush.bf16.msra.mxu0 %v40
  %49 = vmatpush.bf16.msra.mxu0 %v31
  %50 = vmatmul.bf16.gmra.mxu0 %v36
  %v51 = vpop.f32.mrf.mxu0
  %v52 = vadd.f32 %v23, %v51
  %v53 = vpop.f32.mrf.mxu0
  %54 = vdwg.mxu0
  %v55 = vmax.f32 %v52, 0.0
  %v56 = vpack.c.bf16 %v55, %v55
  %vm57 = vcmask 519168
  %58 = vst.msk [vmem:[%s3] sm:$0xf] %vm57, %v56
  // Predicated region
  $region14: #{encoder_forward.10} parent=0 // pred_check
    _
  $region15: #{encoder_forward.10} parent=0 // pred_check_branch
    %60 = sbr.rel (0) target = $region17
  $region16: #{encoder_forward.10} parent=0 // pred_region
    _
  $region17: #{encoder_forward.10} parent=0 // pred_fallthru
    _
  // Predicated region
  $region18: #{encoder_forward.10} parent=0 // pred_check
    _
  $region19: #{encoder_forward.10} parent=0 // pred_check_branch
    %62 = sbr.rel (0) target = $region21
  $region20: #{encoder_forward.10} parent=0 // pred_region
    _
  $region21: #{encoder_forward.10} parent=0 // pred_fallthru
    _

// kernel: encoder_forward.11
$region0: #{encoder_forward.11}
  #allocation0 [shape = 'u32[]', space=smem, size = 0x4, offset = 0x4, fixed_abs, tag = 'smem constant byte address 0x4 - core index']
  #allocation1 [shape = 'u32[72,128]{1,0:T(1,128)}', space=vmem, size = 0x9000, scoped, tag = 'internal scratch']
  %s0 = inlined_call_operand.vmem [shape: bf16[16,72], index: 0, kind: input, shape index: {}]
  %s1 = inlined_call_operand.vmem [shape: f32[16,1], index: 1, kind: input, shape index: {}]
  %s2 = inlined_call_operand.vmem [shape: bf16[72,16], index: 2, kind: input, shape index: {}]
  %s3 = inlined_call_operand.vmem [shape: bf16[16,16], index: 3, kind: output, shape index: {}]
  %s4 = sld [smem:[#allocation0]]
  $region22: #{encoder_forward.11} parent=0
    _
  %s6 = ssub.s32 1, %s4
  %s7 = scalar_select 0, %s6, %s4
  // Predicated region
  $region2: #{encoder_forward.11} parent=0 // pred_check
    _
  $region3: #{encoder_forward.11} parent=0 // pred_check_branch
    %9 = sbr.rel (0) target = $region5
  $region4: #{encoder_forward.11} parent=0 // pred_region
    _
  $region5: #{encoder_forward.11} parent=0 // pred_fallthru
    _
  // Predicated region
  $region6: #{encoder_forward.11} parent=0 // pred_check
    _
  $region7: #{encoder_forward.11} parent=0 // pred_check_branch
    %11 = sbr.rel (0) target = $region9
  $region8: #{encoder_forward.11} parent=0 // pred_region
    _
  $region9: #{encoder_forward.11} parent=0 // pred_fallthru
    _
  // Predicated region
  $region10: #{encoder_forward.11} parent=0 // pred_check
    _
  $region11: #{encoder_forward.11} parent=0 // pred_check_branch
    %13 = sbr.rel (0) target = $region13
  $region12: #{encoder_forward.11} parent=0 // pred_region
    _
  $region13: #{encoder_forward.11} parent=0 // pred_fallthru
    _
  %v15 = vld [vmem:[%s0] sm:$0xf]
  %v16 = vld [vmem:[%s0 + $0x4] sm:$0xf]
  %v17 = vld [vmem:[%s2] sm:$0xf]
  %v18 = vld [vmem:[%s2 + $0x4] sm:$0xf]
  %v19 = vld [vmem:[%s2 + $0x8] sm:$0xf]
  %v20 = vld [vmem:[%s2 + $0xc] sm:$0xf]
  %v21 = vld [vmem:[%s2 + $0x10] sm:$0xf]
  %v22 = vld [vmem:[%s2 + $0x14] sm:$0xf]
  %v23 = vld [vmem:[%s2 + $0x18] sm:$0xf]
  %v24 = vld [vmem:[%s2 + $0x1c] sm:$0xf]
  %v25 = vld [vmem:[%s2 + $0x20] sm:$0xf]
  %v26 = vld [vmem:[%s1] sm:$0xff]
  %v27 = vld [vmem:[%s1 + $0x8] sm:$0xff]
  %29 = vset.pattern.permute.xlu0 0
  %30 = vperm.xlu0 %29, %v26
  %v31 = vpop.permute.xlu0 %30
  %34 = vset.pattern.permute.xlu0 0
  %35 = vperm.xlu0 %34, %v27
  %v36 = vpop.permute.xlu0 %35
  %v40 = vunpack.c.l.b16 %v15
  %v41 = vunpack.c.l.b16 %v16
  %v42 = vpack.c.b16 %v41, %v40
  %v52 = vunpack.c.l.b16 %v17
  %v53 = vunpack.c.l.b16 %v18
  %v54 = vunpack.c.l.b16 %v19
  %v55 = vunpack.c.l.b16 %v20
  %v56 = vunpack.c.l.b16 %v21
  %v57 = vunpack.c.l.b16 %v22
  %v58 = vunpack.c.l.b16 %v23
  %v59 = vunpack.c.l.b16 %v24
  %v60 = vunpack.c.l.b16 %v25
  %v61 = vpack.c.b16 %v53, %v52
  %v62 = vpack.c.b16 %v55, %v54
  %v63 = vpack.c.b16 %v57, %v56
  %v64 = vpack.c.b16 %v59, %v58
  %v65 = vpack.c.b16 %v60, %v60
  %vm70 = vcmask 588800
  %v72 = vsel %vm70, %v42, 0
  %vm74 = vcmask 1043456
  %v76 = vsel %vm74, %v65, 0
  %78 = vmatpush.bf16.msra.mxu0 0
  %79 = vmatpush.bf16.msra.mxu0 0
  %80 = vmatpush.bf16.msra.mxu0 0
  %81 = vmatpush.bf16.msra.mxu0 %v76
  %82 = vmatpush.bf16.msra.mxu0 %v64
  %83 = vmatpush.bf16.msra.mxu0 %v63
  %84 = vmatpush.bf16.msra.mxu0 %v62
  %85 = vmatpush.bf16.msra.mxu0 %v61
  %86 = vmatmul.bf16.gmra.mxu0 %v72
  %v87 = vpop.f32.mrf.mxu0
  %v88 = vadd.f32 %v31, %v87
  %v89 = vpop.f32.mrf.mxu0
  %v90 = vadd.f32 %v36, %v89
  %91 = vdwg.mxu0
  %v92 = vmax.f32 %v88, 0.0
  %v93 = vmax.f32 %v90, 0.0
  %v94 = vpack.c.bf16 %v92, %v92
  %v95 = vpack.c.bf16 %v93, %v93
  %vm96 = vcmask 125952
  %97 = vst.msk [vmem:[%s3] sm:$0xf] %vm96, %v94
  %98 = vst.msk [vmem:[%s3 + $0x4] sm:$0xf] %vm96, %v95
  // Predicated region
  $region14: #{encoder_forward.11} parent=0 // pred_check
    _
  $region15: #{encoder_forward.11} parent=0 // pred_check_branch
    %100 = sbr.rel (0) target = $region17
  $region16: #{encoder_forward.11} parent=0 // pred_region
    _
  $region17: #{encoder_forward.11} parent=0 // pred_fallthru
    _
  // Predicated region
  $region18: #{encoder_forward.11} parent=0 // pred_check
    _
  $region19: #{encoder_forward.11} parent=0 // pred_check_branch
    %102 = sbr.rel (0) target = $region21
  $region20: #{encoder_forward.11} parent=0 // pred_region
    _
  $region21: #{encoder_forward.11} parent=0 // pred_fallthru
    _

// kernel: encoder_forward.12
$region0: #{encoder_forward.12}
  #allocation0 [shape = 'u32[]', space=smem, size = 0x4, offset = 0x4, fixed_abs, tag = 'smem constant byte address 0x4 - core index']
  #allocation1 [shape = 'u32[72,128]{1,0:T(1,128)}', space=vmem, size = 0x9000, scoped, tag = 'internal scratch']
  %s0 = inlined_call_operand.vmem [shape: bf16[16,48], index: 0, kind: input, shape index: {}]
  %s1 = inlined_call_operand.vmem [shape: f32[16,1], index: 1, kind: input, shape index: {}]
  %s2 = inlined_call_operand.vmem [shape: bf16[48,8], index: 2, kind: input, shape index: {}]
  %s3 = inlined_call_operand.vmem [shape: bf16[16,8], index: 3, kind: output, shape index: {}]
  %s4 = sld [smem:[#allocation0]]
  $region22: #{encoder_forward.12} parent=0
    _
  %s6 = ssub.s32 1, %s4
  %s7 = scalar_select 0, %s6, %s4
  // Predicated region
  $region2: #{encoder_forward.12} parent=0 // pred_check
    _
  $region3: #{encoder_forward.12} parent=0 // pred_check_branch
    %9 = sbr.rel (0) target = $region5
  $region4: #{encoder_forward.12} parent=0 // pred_region
    _
  $region5: #{encoder_forward.12} parent=0 // pred_fallthru
    _
  // Predicated region
  $region6: #{encoder_forward.12} parent=0 // pred_check
    _
  $region7: #{encoder_forward.12} parent=0 // pred_check_branch
    %11 = sbr.rel (0) target = $region9
  $region8: #{encoder_forward.12} parent=0 // pred_region
    _
  $region9: #{encoder_forward.12} parent=0 // pred_fallthru
    _
  // Predicated region
  $region10: #{encoder_forward.12} parent=0 // pred_check
    _
  $region11: #{encoder_forward.12} parent=0 // pred_check_branch
    %13 = sbr.rel (0) target = $region13
  $region12: #{encoder_forward.12} parent=0 // pred_region
    _
  $region13: #{encoder_forward.12} parent=0 // pred_fallthru
    _
  %v15 = vld [vmem:[%s0] sm:$0xf]
  %v16 = vld [vmem:[%s0 + $0x4] sm:$0xf]
  %v17 = vld [vmem:[%s2] sm:$0xf]
  %v18 = vld [vmem:[%s2 + $0x4] sm:$0xf]
  %v19 = vld [vmem:[%s2 + $0x8] sm:$0xf]
  %v20 = vld [vmem:[%s2 + $0xc] sm:$0xf]
  %v21 = vld [vmem:[%s2 + $0x10] sm:$0xf]
  %v22 = vld [vmem:[%s2 + $0x14] sm:$0xf]
  %v23 = vld [vmem:[%s1] sm:$0xff]
  %v24 = vld [vmem:[%s1 + $0x8] sm:$0xff]
  %26 = vset.pattern.permute.xlu0 0
  %27 = vperm.xlu0 %26, %v23
  %v28 = vpop.permute.xlu0 %27
  %31 = vset.pattern.permute.xlu0 0
  %32 = vperm.xlu0 %31, %v24
  %v33 = vpop.permute.xlu0 %32
  %v37 = vunpack.c.l.b16 %v15
  %v38 = vunpack.c.l.b16 %v16
  %v39 = vpack.c.b16 %v38, %v37
  %v46 = vunpack.c.l.b16 %v17
  %v47 = vunpack.c.l.b16 %v18
  %v48 = vunpack.c.l.b16 %v19
  %v49 = vunpack.c.l.b16 %v20
  %v50 = vunpack.c.l.b16 %v21
  %v51 = vunpack.c.l.b16 %v22
  %v52 = vpack.c.b16 %v47, %v46
  %v53 = vpack.c.b16 %v49, %v48
  %v54 = vpack.c.b16 %v51, %v50
  %vm58 = vcmask 392192
  %v60 = vsel %vm58, %v39, 0
  %62 = vmatpush.bf16.msra.mxu0 0
  %63 = vmatpush.bf16.msra.mxu0 0
  %64 = vmatpush.bf16.msra.mxu0 0
  %65 = vmatpush.bf16.msra.mxu0 0
  %66 = vmatpush.bf16.msra.mxu0 0
  %67 = vmatpush.bf16.msra.mxu0 %v54
  %68 = vmatpush.bf16.msra.mxu0 %v53
  %69 = vmatpush.bf16.msra.mxu0 %v52
  %70 = vmatmul.bf16.gmra.mxu0 %v60
  %v71 = vpop.f32.mrf.mxu0
  %v72 = vadd.f32 %v28, %v71
  %v73 = vpop.f32.mrf.mxu0
  %v74 = vadd.f32 %v33, %v73
  %75 = vdwg.mxu0
  %v76 = vmax.f32 %v72, 0.0
  %v77 = vmax.f32 %v74, 0.0
  %v78 = vpack.c.bf16 %v76, %v76
  %v79 = vpack.c.bf16 %v77, %v77
  %vm80 = vcmask 60416
  %81 = vst.msk [vmem:[%s3] sm:$0xf] %vm80, %v78
  %82 = vst.msk [vmem:[%s3 + $0x4] sm:$0xf] %vm80, %v79
  // Predicated region
  $region14: #{encoder_forward.12} parent=0 // pred_check
    _
  $region15: #{encoder_forward.12} parent=0 // pred_check_branch
    %84 = sbr.rel (0) target = $region17
  $region16: #{encoder_forward.12} parent=0 // pred_region
    _
  $region17: #{encoder_forward.12} parent=0 // pred_fallthru
    _
  // Predicated region
  $region18: #{encoder_forward.12} parent=0 // pred_check
    _
  $region19: #{encoder_forward.12} parent=0 // pred_check_branch
    %86 = sbr.rel (0) target = $region21
  $region20: #{encoder_forward.12} parent=0 // pred_region
    _
  $region21: #{encoder_forward.12} parent=0 // pred_fallthru
    _

// kernel: encoder_forward.13
$region0: #{encoder_forward.13}
  #allocation0 [shape = 'u32[]', space=smem, size = 0x4, offset = 0x4, fixed_abs, tag = 'smem constant byte address 0x4 - core index']
  #allocation1 [shape = 'u32[72,128]{1,0:T(1,128)}', space=vmem, size = 0x9000, scoped, tag = 'internal scratch']
  %s0 = inlined_call_operand.vmem [shape: bf16[2,64], index: 0, kind: input, shape index: {}]
  %s1 = inlined_call_operand.vmem [shape: bf16[64,64], index: 1, kind: input, shape index: {}]
  %s2 = inlined_call_operand.vmem [shape: bf16[64,64], index: 2, kind: input, shape index: {}]
  %s3 = inlined_call_operand.vmem [shape: f32[1,64], index: 3, kind: input, shape index: {}]
  %s4 = inlined_call_operand.vmem [shape: f32[1,64], index: 4, kind: input, shape index: {}]
  %s5 = inlined_call_operand.vmem [shape: f32[2,64], index: 5, kind: input, shape index: {}]
  %s6 = inlined_call_operand.hbm [shape: f32[2,64], index: 6, kind: output, shape index: {0}]
  %s7 = inlined_call_operand.hbm [shape: f32[2,64], index: 7, kind: output, shape index: {1}]
  %s8 = inlined_call_operand.vmem [shape: f32[2,64], index: 8, kind: output, shape index: {2}]
  %9 = xla_tuple %s6, %s7, %s8
  %s10 = sld [smem:[#allocation0]]
  $region50: #{encoder_forward.13} parent=0
    _
  %s12 = ssub.s32 1, %s10
  %s13 = scalar_select 0, %s12, %s10
  $region1: #{encoder_forward.13} parent=0
    #allocation2 [shape = 'u8[1024]{0}', space=vmem, size = 0x400, scoped, tag = 'output window, operand 0, single buffered']
    #allocation3 [shape = 's32[1]{0}', space=sflag, size = 0x4, scoped, tag = 'scoped memory for encoder_forward.13']
    #allocation4 [shape = 'u8[1024]{0}', space=vmem, size = 0x400, scoped, tag = 'output window, operand 1, single buffered']
    #allocation5 [shape = 's32[1]{0}', space=sflag, size = 0x4, scoped, tag = 'scoped memory for encoder_forward.13']
    %14 = vsyncpa [#allocation3], 0
    %15 = vsyncpa [#allocation5], 0
    // Predicated region
    $region2: #{encoder_forward.13} parent=1 // pred_check
      _
    $region3: #{encoder_forward.13} parent=1 // pred_check_branch
      %17 = sbr.rel (0) target = $region5
    $region4: #{encoder_forward.13} parent=1 // pred_region
      _
    $region5: #{encoder_forward.13} parent=1 // pred_fallthru
      _
    // Predicated region
    $region6: #{encoder_forward.13} parent=1 // pred_check
      _
    $region7: #{encoder_forward.13} parent=1 // pred_check_branch
      %19 = sbr.rel (0) target = $region9
    $region8: #{encoder_forward.13} parent=1 // pred_region
      _
    $region9: #{encoder_forward.13} parent=1 // pred_fallthru
      _
    // Predicated region
    $region10: #{encoder_forward.13} parent=1 // pred_check
      _
    $region11: #{encoder_forward.13} parent=1 // pred_check_branch
      %21 = sbr.rel (0) target = $region13
    $region12: #{encoder_forward.13} parent=1 // pred_region
      _
    $region13: #{encoder_forward.13} parent=1 // pred_fallthru
      _
    // Predicated region
    $region14: #{encoder_forward.13} parent=1 // pred_check
      _
    $region15: #{encoder_forward.13} parent=1 // pred_check_branch
      %23 = sbr.rel (0) target = $region17
    $region16: #{encoder_forward.13} parent=1 // pred_region
      _
    $region17: #{encoder_forward.13} parent=1 // pred_fallthru
      _
    // Predicated region
    $region18: #{encoder_forward.13} parent=1 // pred_check
      _
    $region19: #{encoder_forward.13} parent=1 // pred_check_branch
      %25 = sbr.rel (0) target = $region21
    $region20: #{encoder_forward.13} parent=1 // pred_region
      _
    $region21: #{encoder_forward.13} parent=1 // pred_fallthru
      _
    // Predicated region
    $region22: #{encoder_forward.13} parent=1 // pred_check
      _
    $region23: #{encoder_forward.13} parent=1 // pred_check_branch
      %27 = sbr.rel (0) target = $region25
    $region24: #{encoder_forward.13} parent=1 // pred_region
      _
    $region25: #{encoder_forward.13} parent=1 // pred_fallthru
      _
    %v29 = vld [vmem:[%s0] sm:$0x1]
    %v30 = vld [vmem:[%s1] sm:$0xf]
    %v31 = vld [vmem:[%s1 + $0x4] sm:$0xf]
    %v32 = vld [vmem:[%s1 + $0x8] sm:$0xf]
    %v33 = vld [vmem:[%s1 + $0xc] sm:$0xf]
    %v34 = vld [vmem:[%s1 + $0x10] sm:$0xf]
    %v35 = vld [vmem:[%s1 + $0x14] sm:$0xf]
    %v36 = vld [vmem:[%s1 + $0x18] sm:$0xf]
    %v37 = vld [vmem:[%s1 + $0x1c] sm:$0xf]
    %v38 = vld [vmem:[%s3] sm:$0x1]
    %v40 = vperm.slane %v38, 0
    %v50 = vunpack.c.l.b16 %v30
    %v51 = vunpack.c.l.b16 %v31
    %v52 = vunpack.c.l.b16 %v32
    %v53 = vunpack.c.l.b16 %v33
    %v54 = vunpack.c.l.b16 %v34
    %v55 = vunpack.c.l.b16 %v35
    %v56 = vunpack.c.l.b16 %v36
    %v57 = vunpack.c.l.b16 %v37
    %v58 = vpack.c.b16 %v51, %v50
    %v59 = vpack.c.b16 %v53, %v52
    %v60 = vpack.c.b16 %v55, %v54
    %v61 = vpack.c.b16 %v57, %v56
    %vm66 = vcmask 523264
    %v68 = vsel %vm66, %v29, 0
    %70 = vmatpush.bf16.msra.mxu0 0
    %71 = vmatpush.bf16.msra.mxu0 0
    %72 = vmatpush.bf16.msra.mxu0 0
    %73 = vmatpush.bf16.msra.mxu0 0
    %74 = vmatpush.bf16.msra.mxu0 %v61
    %75 = vmatpush.bf16.msra.mxu0 %v60
    %76 = vmatpush.bf16.msra.mxu0 %v59
    %77 = vmatpush.bf16.msra.mxu0 %v58
    %78 = vmatmul.bf16.gmra.mxu0 %v68
    %v79 = vpop.f32.mrf.mxu0
    %v80 = vadd.f32 %v40, %v79
    %v81 = vpop.f32.mrf.mxu0
    %82 = vdwg.mxu0
    %v83 = vld [vmem:[%s2] sm:$0xf]
    %v84 = vld [vmem:[%s2 + $0x4] sm:$0xf]
    %v85 = vld [vmem:[%s2 + $0x8] sm:$0xf]
    %v86 = vld [vmem:[%s2 + $0xc] sm:$0xf]
    %v87 = vld [vmem:[%s2 + $0x10] sm:$0xf]
    %v88 = vld [vmem:[%s2 + $0x14] sm:$0xf]
    %v89 = vld [vmem:[%s2 + $0x18] sm:$0xf]
    %v90 = vld [vmem:[%s2 + $0x1c] sm:$0xf]
    %v91 = vld [vmem:[%s4] sm:$0x1]
    %v93 = vperm.slane %v91, 0
    %v103 = vunpack.c.l.b16 %v83
    %v104 = vunpack.c.l.b16 %v84
    %v105 = vunpack.c.l.b16 %v85
    %v106 = vunpack.c.l.b16 %v86
    %v107 = vunpack.c.l.b16 %v87
    %v108 = vunpack.c.l.b16 %v88
    %v109 = vunpack.c.l.b16 %v89
    %v110 = vunpack.c.l.b16 %v90
    %v111 = vpack.c.b16 %v104, %v103
    %v112 = vpack.c.b16 %v106, %v105
    %v113 = vpack.c.b16 %v108, %v107
    %v114 = vpack.c.b16 %v110, %v109
    %119 = vmatpush.bf16.msra.mxu0 0
    %120 = vmatpush.bf16.msra.mxu0 0
    %121 = vmatpush.bf16.msra.mxu0 0
    %122 = vmatpush.bf16.msra.mxu0 0
    %123 = vmatpush.bf16.msra.mxu0 %v114
    %124 = vmatpush.bf16.msra.mxu0 %v113
    %125 = vmatpush.bf16.msra.mxu0 %v112
    %126 = vmatpush.bf16.msra.mxu0 %v111
    %127 = vmatmul.bf16.gmra.mxu0 %v68
    %v128 = vpop.f32.mrf.mxu0
    %v129 = vadd.f32 %v93, %v128
    %v130 = vpop.f32.mrf.mxu0
    %131 = vdwg.mxu0
    %vm132 = vcmask 517120
    %133 = vst.msk [vmem:[#allocation2] sm:$0x3] %vm132, %v80
    %134 = vst.msk [vmem:[#allocation4] sm:$0x3] %vm132, %v129
    %v135 = vmul.f32 %v129, 0.5
    %v136 = vmul.f32 %v135, 1.442695
    %v137 = vpow.pop %v136
    %v138 = vld [vmem:[%s5] sm:$0x3]
    %v139 = vmul.f32 %v137, %v138
    %v140 = vadd.f32 %v80, %v139
    %141 = vst.msk [vmem:[%s8] sm:$0x3] %vm132, %v140
    // Predicated region
    $region26: #{encoder_forward.13} parent=1 // pred_check
      _
    $region27: #{encoder_forward.13} parent=1 // pred_check_branch
      %143 = sbr.rel (0) target = $region29
    $region28: #{encoder_forward.13} parent=1 // pred_region
      %145 = vsyncadd [#allocation3], 0
      %s147 = sshll.u32 [#allocation2], 4
      %s148 = int_to_ptr.vmem [resolvable:$true] %s147
      %s149 = sshll.u32 %s6, 4
      %s150 = int_to_ptr.hbm [resolvable:$true] %s149
      %152 = dma.vmem_to_hbm [thread:$0]  %s148, 32, %s150, [#allocation3]
    $region29: #{encoder_forward.13} parent=1 // pred_fallthru
      _
    // Predicated region
    $region30: #{encoder_forward.13} parent=1 // pred_check
      _
    $region31: #{encoder_forward.13} parent=1 // pred_check_branch
      %154 = sbr.rel (0) target = $region33
    $region32: #{encoder_forward.13} parent=1 // pred_region
      %156 = vsyncadd [#allocation5], 0
      %s158 = sshll.u32 [#allocation4], 4
      %s159 = int_to_ptr.vmem [resolvable:$true] %s158
      %s160 = sshll.u32 %s7, 4
      %s161 = int_to_ptr.hbm [resolvable:$true] %s160
      %163 = dma.vmem_to_hbm [thread:$0]  %s159, 32, %s161, [#allocation5]
    $region33: #{encoder_forward.13} parent=1 // pred_fallthru
      _
    // Predicated region
    $region34: #{encoder_forward.13} parent=1 // pred_check
      _
    $region35: #{encoder_forward.13} parent=1 // pred_check_branch
      %165 = sbr.rel (0) target = $region37
    $region36: #{encoder_forward.13} parent=1 // pred_region
      _
    $region37: #{encoder_forward.13} parent=1 // pred_fallthru
      _
    // Predicated region
    $region38: #{encoder_forward.13} parent=1 // pred_check
      _
    $region39: #{encoder_forward.13} parent=1 // pred_check_branch
      %167 = sbr.rel (0) target = $region41
    $region40: #{encoder_forward.13} parent=1 // pred_region
      %169 = dma.done [#allocation3], 32
    $region41: #{encoder_forward.13} parent=1 // pred_fallthru
      _
    // Predicated region
    $region42: #{encoder_forward.13} parent=1 // pred_check
      _
    $region43: #{encoder_forward.13} parent=1 // pred_check_branch
      %171 = sbr.rel (0) target = $region45
    $region44: #{encoder_forward.13} parent=1 // pred_region
      %173 = dma.done [#allocation5], 32
    $region45: #{encoder_forward.13} parent=1 // pred_fallthru
      _
    // Predicated region
    $region46: #{encoder_forward.13} parent=1 // pred_check
      _
    $region47: #{encoder_forward.13} parent=1 // pred_check_branch
      %175 = sbr.rel (0) target = $region49
    $region48: #{encoder_forward.13} parent=1 // pred_region
      _
    $region49: #{encoder_forward.13} parent=1 // pred_fallthru
      _
    %176 = vsyncpa [#allocation3], 1
    %177 = vsyncpa [#allocation5], 1

</llo_original>
